<compile_context>
chip_gen: v7x
topology: tpu7x:2x2x1
jax: 0.10.0
libtpu: 0.0.40
codegen_flags: <defaults>
</compile_context>

<pallas_src>
import functools

import jax
import jax.numpy as jnp
from jax import lax
from jax.experimental import pallas as pl
from jax.experimental.pallas import tpu as pltpu

LANE = 128  # padded hidden width so every gate / head / memory slice is lane-aligned


def dnc_kernel(x2_ref, w_ihT_ref, w_hhT_ref, b_ref,
               mem_ref, w_headsT_ref, b_heads_ref,
               out_ref, new_mem_ref, *, batch):
    N = x2_ref.shape[0]              # N = T * B (flattened time x batch)
    HP = w_hhT_ref.shape[0]          # lane-padded hidden width (128)
    M = mem_ref.shape[0]
    B = batch
    T = N // B

    # ---- hoisted, time-invariant input projection (+ combined bias): one MXU call, kept in vregs
    xw = (jnp.dot(x2_ref[...], w_ihT_ref[...], preferred_element_type=jnp.float32)
          + b_ref[...])                                                    # (N, 4*HP)

    w_hhT = w_hhT_ref[...]                                                 # (HP, 4*HP)

    def gates_to_hc(gates, c):
        # PyTorch gate order i, f, g, o; each quarter is a full 128-lane-aligned slice.
        sig = jax.nn.sigmoid(gates)     # one EUP push covers i, f, o
        th = jnp.tanh(gates)            # one EUP push covers g
        i_g = sig[:, 0 * HP:1 * HP]
        f_g = sig[:, 1 * HP:2 * HP]
        g_g = th[:, 2 * HP:3 * HP]
        o_g = sig[:, 3 * HP:4 * HP]
        c_new = f_g * c + i_g * g_g
        h_new = o_g * jnp.tanh(c_new)
        return h_new, c_new

    # ---- LSTM recurrence, statically unrolled; t == 0 peeled (h0 = c0 = 0 -> no h @ W_hh) ----
    hs = []
    h, c = gates_to_hc(xw[0:B, :], jnp.zeros((B, HP), jnp.float32))
    hs.append(h)
    for t in range(1, T):
        gates = xw[t * B:(t + 1) * B, :] + jnp.dot(
            h, w_hhT, preferred_element_type=jnp.float32)                 # (B, 4*HP)
        h, c = gates_to_hc(gates, c)
        hs.append(h)
    out2 = jnp.concatenate(hs, axis=0)                                    # (N, HP), stays in vregs

    # ---- MemoryModule: fused read/write head projection, one (N,HP) x (HP,2M) matmul ----
    logits = (jnp.dot(out2, w_headsT_ref[...], preferred_element_type=jnp.float32)
              + b_heads_ref[...])                                          # (N, 2M)

    def softmax_last(z):
        z = z - jnp.max(z, axis=-1, keepdims=True)
        e = jnp.exp(z)
        d = jnp.sum(e, axis=-1, keepdims=True)
        r = pl.reciprocal(d, approx=True)      # EUP vrcp (free slot)
        r = r * (2.0 - d * r)                  # one Newton-Raphson step -> ~f32 accuracy
        return e * r

    r_w = softmax_last(logits[:, :M])                                      # (N, M) read weights
    w_w = softmax_last(logits[:, M:])                                      # (N, M) write weights

    # Read against the PRE-update memory (matches the PyTorch ordering).
    read_mem = jnp.dot(r_w, mem_ref[...], preferred_element_type=jnp.float32)   # (N, HP)
    # sum_n outer(w_w[n], h[n]) == w_w^T @ out2; TN contraction avoids materializing a transpose.
    mem_update = lax.dot_general(w_w, out2, (((0,), (0,)), ((), ())),
                                 preferred_element_type=jnp.float32)            # (M, HP)

    # Exactly one full-width, lane-dense store per output.
    out_ref[...] = read_mem + out2
    new_mem_ref[...] = mem_ref[...] + mem_update


def dnc_forward(x, params):
    T, B, I = x.shape
    H = params['w_hh'].shape[1]
    M, D = params['memory'].shape
    assert D == H, "memory_dim must equal LSTM hidden_size (required by the PyTorch module)"
    HP = max(LANE, H)
    assert HP % LANE == 0

    f32 = jnp.float32
    # Per-gate zero-padding of the hidden axis to HP lanes.  Padded weight columns / bias lanes
    # are zero, so padded lanes of c and h stay identically zero through the recurrence and the
    # head stage; the wrapper slices the valid H lanes back out at the end.
    w_ihT = jnp.zeros((I, 4, HP), f32).at[:, :, :H].set(
        params['w_ih'].T.reshape(I, 4, H)).reshape(I, 4 * HP)
    w_hhT = jnp.zeros((HP, 4, HP), f32).at[:H, :, :H].set(
        params['w_hh'].T.reshape(H, 4, H)).reshape(HP, 4 * HP)
    b = jnp.zeros((4, HP), f32).at[:, :H].set(
        (params['b_ih'] + params['b_hh']).reshape(4, H)).reshape(1, 4 * HP)
    # Fused read/write heads: (HP, 2M); the two M-wide halves are lane-aligned.
    w_headsT = jnp.zeros((HP, 2 * M), f32).at[:H, :].set(
        jnp.concatenate([params['w_read'].T, params['w_write'].T], axis=1))
    b_heads = jnp.concatenate([params['b_read'], params['b_write']]).reshape(1, 2 * M)
    mem_p = jnp.zeros((M, HP), f32).at[:, :H].set(params['memory'])

    x2 = x.reshape(T * B, I)                                               # (N, I), lane-dense rows

    vmem = pl.BlockSpec(memory_space=pltpu.MemorySpace.VMEM)
    kernel = functools.partial(dnc_kernel, batch=B)
    out_p, new_mem_p = pl.pallas_call(
        kernel,
        out_shape=(jax.ShapeDtypeStruct((T * B, HP), f32),
                   jax.ShapeDtypeStruct((M, HP), f32)),
        in_specs=[vmem] * 7,
        out_specs=(vmem, vmem),
    )(x2, w_ihT, w_hhT, b, mem_p, w_headsT, b_heads)
    # Padded lanes are identically zero; slice back to the logical hidden width here.
    return out_p[:, :H].reshape(T, B, H), new_mem_p[:, :H]


def dnc_ref(x, params):
    """Pure-JAX reference mirroring the PyTorch forward."""
    T, B, I = x.shape
    H = params['w_hh'].shape[1]
    w_ih, w_hh = params['w_ih'], params['w_hh']
    b = params['b_ih'] + params['b_hh']

    def step(carry, x_t):
        h, c = carry
        g = x_t @ w_ih.T + h @ w_hh.T + b
        i, f, gg, o = jnp.split(g, 4, axis=-1)
        c = jax.nn.sigmoid(f) * c + jax.nn.sigmoid(i) * jnp.tanh(gg)
        h = jax.nn.sigmoid(o) * jnp.tanh(c)
        return (h, c), h

    (_, _), hs = lax.scan(step, (jnp.zeros((B, H)), jnp.zeros((B, H))), x)
    out2 = hs.reshape(T * B, H)
    rw = jax.nn.softmax(out2 @ params['w_read'].T + params['b_read'], axis=-1)
    read_mem = rw @ params['memory']
    ww = jax.nn.softmax(out2 @ params['w_write'].T + params['b_write'], axis=-1)
    mem_update = ww.T @ out2
    return (read_mem + out2).reshape(T, B, H), params['memory'] + mem_update


if __name__ == "__main__":
    # Small shapes: input_size=16, hidden_size=memory_dim=32, memory_size=128,
    # num_layers=1, seq T=8, batch B=2.
    input_size, hidden_size, memory_size, memory_dim = 16, 32, 128, 32
    T, B = 8, 2

    key = jax.random.PRNGKey(0)
    ks = jax.random.split(key, 10)
    params = {
        'w_ih':    jax.random.normal(ks[0], (4 * hidden_size, input_size), jnp.float32) * 0.1,
        'w_hh':    jax.random.normal(ks[1], (4 * hidden_size, hidden_size), jnp.float32) * 0.1,
        'b_ih':    jax.random.normal(ks[2], (4 * hidden_size,), jnp.float32) * 0.1,
        'b_hh':    jax.random.normal(ks[3], (4 * hidden_size,), jnp.float32) * 0.1,
        'memory':  jax.random.normal(ks[4], (memory_size, memory_dim), jnp.float32),
        'w_read':  jax.random.normal(ks[5], (memory_size, memory_dim), jnp.float32) * 0.1,
        'b_read':  jax.random.normal(ks[6], (memory_size,), jnp.float32) * 0.1,
        'w_write': jax.random.normal(ks[7], (memory_size, memory_dim), jnp.float32) * 0.1,
        'b_write': jax.random.normal(ks[8], (memory_size,), jnp.float32) * 0.1,
    }
    x = jax.random.normal(ks[9], (T, B, input_size), jnp.float32)

    out, new_mem = dnc_forward(x, params)
    jax.block_until_ready((out, new_mem))

    ref_out, ref_mem = dnc_ref(x, params)
    assert out.shape == (T, B, hidden_size)
    assert new_mem.shape == (memory_size, memory_dim)
    assert jnp.allclose(out, ref_out, atol=1e-4, rtol=1e-4)
    assert jnp.allclose(new_mem, ref_mem, atol=1e-3, rtol=1e-3)
    print("KERNEL_OK")
</pallas_src>

<mosaic_0001>
module attributes {stable_mosaic.version = 11 : i64} {
  func.func @dnc_kernel(%arg0: memref<16x16xf32, #tpu.memory_space<vmem>>, %arg1: memref<16x512xf32, #tpu.memory_space<vmem>>, %arg2: memref<128x512xf32, #tpu.memory_space<vmem>>, %arg3: memref<1x512xf32, #tpu.memory_space<vmem>>, %arg4: memref<128x128xf32, #tpu.memory_space<vmem>>, %arg5: memref<128x256xf32, #tpu.memory_space<vmem>>, %arg6: memref<1x256xf32, #tpu.memory_space<vmem>>, %arg7: memref<16x128xf32, #tpu.memory_space<vmem>>, %arg8: memref<128x128xf32, #tpu.memory_space<vmem>>) attributes {dimension_semantics = [], scalar_prefetch = 0 : i64, scratch_operands = 0 : i64, tpu.core_type = #tpu.core_type<tc>} {
    %c0 = arith.constant 0 : index
    %c0_0 = arith.constant 0 : index
    %0 = vector.load %arg0[%c0, %c0_0] : memref<16x16xf32, #tpu.memory_space<vmem>>, vector<16x16xf32>
    %c0_1 = arith.constant 0 : index
    %c0_2 = arith.constant 0 : index
    %1 = vector.load %arg1[%c0_1, %c0_2] : memref<16x512xf32, #tpu.memory_space<vmem>>, vector<16x512xf32>
    %cst = arith.constant dense<0.000000e+00> : vector<16x512xf32>
    %2 = tpu.matmul %0, %1, %cst {dimension_numbers = #tpu.dot_dimension_numbers<[1], [0], [0], [1], [0, 0, 1, 1], [], []>} : vector<16x16xf32>, vector<16x512xf32>, vector<16x512xf32> -> vector<16x512xf32>
    %c0_3 = arith.constant 0 : index
    %c0_4 = arith.constant 0 : index
    %3 = vector.load %arg3[%c0_3, %c0_4] : memref<1x512xf32, #tpu.memory_space<vmem>>, vector<1x512xf32>
    %4 = vector.broadcast %3 : vector<1x512xf32> to vector<16x512xf32>
    %5 = arith.addf %2, %4 : vector<16x512xf32>
    %c0_5 = arith.constant 0 : index
    %c0_6 = arith.constant 0 : index
    %6 = vector.load %arg2[%c0_5, %c0_6] : memref<128x512xf32, #tpu.memory_space<vmem>>, vector<128x512xf32>
    %7 = vector.extract_strided_slice %5 {offsets = [0, 0], sizes = [2, 512], strides = [1, 1]} : vector<16x512xf32> to vector<2x512xf32>
    %cst_7 = arith.constant 0.000000e+00 : f32
    %8 = vector.broadcast %cst_7 : f32 to vector<2x128xf32>
    %9 = arith.negf %7 : vector<2x512xf32>
    %10 = math.exp %9 : vector<2x512xf32>
    %cst_8 = arith.constant 1.000000e+00 : f32
    %11 = vector.broadcast %cst_8 : f32 to vector<2x512xf32>
    %12 = arith.addf %11, %10 : vector<2x512xf32>
    %13 = arith.divf %11, %12 : vector<2x512xf32>
    %14 = math.tanh %7 : vector<2x512xf32>
    %15 = vector.extract_strided_slice %13 {offsets = [0, 0], sizes = [2, 128], strides = [1, 1]} : vector<2x512xf32> to vector<2x128xf32>
    %16 = vector.extract_strided_slice %13 {offsets = [0, 128], sizes = [2, 128], strides = [1, 1]} : vector<2x512xf32> to vector<2x128xf32>
    %17 = vector.extract_strided_slice %14 {offsets = [0, 256], sizes = [2, 128], strides = [1, 1]} : vector<2x512xf32> to vector<2x128xf32>
    %18 = vector.extract_strided_slice %13 {offsets = [0, 384], sizes = [2, 128], strides = [1, 1]} : vector<2x512xf32> to vector<2x128xf32>
    %19 = arith.mulf %16, %8 : vector<2x128xf32>
    %20 = arith.mulf %15, %17 : vector<2x128xf32>
    %21 = arith.addf %19, %20 : vector<2x128xf32>
    %22 = math.tanh %21 : vector<2x128xf32>
    %23 = arith.mulf %18, %22 : vector<2x128xf32>
    %24 = vector.extract_strided_slice %5 {offsets = [2, 0], sizes = [2, 512], strides = [1, 1]} : vector<16x512xf32> to vector<2x512xf32>
    %cst_9 = arith.constant dense<0.000000e+00> : vector<2x512xf32>
    %25 = tpu.matmul %23, %6, %cst_9 {dimension_numbers = #tpu.dot_dimension_numbers<[1], [0], [0], [1], [0, 0, 1, 1], [], []>} : vector<2x128xf32>, vector<128x512xf32>, vector<2x512xf32> -> vector<2x512xf32>
    %26 = arith.addf %24, %25 : vector<2x512xf32>
    %27 = arith.negf %26 : vector<2x512xf32>
    %28 = math.exp %27 : vector<2x512xf32>
    %cst_10 = arith.constant 1.000000e+00 : f32
    %29 = vector.broadcast %cst_10 : f32 to vector<2x512xf32>
    %30 = arith.addf %29, %28 : vector<2x512xf32>
    %31 = arith.divf %29, %30 : vector<2x512xf32>
    %32 = math.tanh %26 : vector<2x512xf32>
    %33 = vector.extract_strided_slice %31 {offsets = [0, 0], sizes = [2, 128], strides = [1, 1]} : vector<2x512xf32> to vector<2x128xf32>
    %34 = vector.extract_strided_slice %31 {offsets = [0, 128], sizes = [2, 128], strides = [1, 1]} : vector<2x512xf32> to vector<2x128xf32>
    %35 = vector.extract_strided_slice %32 {offsets = [0, 256], sizes = [2, 128], strides = [1, 1]} : vector<2x512xf32> to vector<2x128xf32>
    %36 = vector.extract_strided_slice %31 {offsets = [0, 384], sizes = [2, 128], strides = [1, 1]} : vector<2x512xf32> to vector<2x128xf32>
    %37 = arith.mulf %34, %21 : vector<2x128xf32>
    %38 = arith.mulf %33, %35 : vector<2x128xf32>
    %39 = arith.addf %37, %38 : vector<2x128xf32>
    %40 = math.tanh %39 : vector<2x128xf32>
    %41 = arith.mulf %36, %40 : vector<2x128xf32>
    %42 = vector.extract_strided_slice %5 {offsets = [4, 0], sizes = [2, 512], strides = [1, 1]} : vector<16x512xf32> to vector<2x512xf32>
    %cst_11 = arith.constant dense<0.000000e+00> : vector<2x512xf32>
    %43 = tpu.matmul %41, %6, %cst_11 {dimension_numbers = #tpu.dot_dimension_numbers<[1], [0], [0], [1], [0, 0, 1, 1], [], []>} : vector<2x128xf32>, vector<128x512xf32>, vector<2x512xf32> -> vector<2x512xf32>
    %44 = arith.addf %42, %43 : vector<2x512xf32>
    %45 = arith.negf %44 : vector<2x512xf32>
    %46 = math.exp %45 : vector<2x512xf32>
    %cst_12 = arith.constant 1.000000e+00 : f32
    %47 = vector.broadcast %cst_12 : f32 to vector<2x512xf32>
    %48 = arith.addf %47, %46 : vector<2x512xf32>
    %49 = arith.divf %47, %48 : vector<2x512xf32>
    %50 = math.tanh %44 : vector<2x512xf32>
    %51 = vector.extract_strided_slice %49 {offsets = [0, 0], sizes = [2, 128], strides = [1, 1]} : vector<2x512xf32> to vector<2x128xf32>
    %52 = vector.extract_strided_slice %49 {offsets = [0, 128], sizes = [2, 128], strides = [1, 1]} : vector<2x512xf32> to vector<2x128xf32>
    %53 = vector.extract_strided_slice %50 {offsets = [0, 256], sizes = [2, 128], strides = [1, 1]} : vector<2x512xf32> to vector<2x128xf32>
    %54 = vector.extract_strided_slice %49 {offsets = [0, 384], sizes = [2, 128], strides = [1, 1]} : vector<2x512xf32> to vector<2x128xf32>
    %55 = arith.mulf %52, %39 : vector<2x128xf32>
    %56 = arith.mulf %51, %53 : vector<2x128xf32>
    %57 = arith.addf %55, %56 : vector<2x128xf32>
    %58 = math.tanh %57 : vector<2x128xf32>
    %59 = arith.mulf %54, %58 : vector<2x128xf32>
    %60 = vector.extract_strided_slice %5 {offsets = [6, 0], sizes = [2, 512], strides = [1, 1]} : vector<16x512xf32> to vector<2x512xf32>
    %cst_13 = arith.constant dense<0.000000e+00> : vector<2x512xf32>
    %61 = tpu.matmul %59, %6, %cst_13 {dimension_numbers = #tpu.dot_dimension_numbers<[1], [0], [0], [1], [0, 0, 1, 1], [], []>} : vector<2x128xf32>, vector<128x512xf32>, vector<2x512xf32> -> vector<2x512xf32>
    %62 = arith.addf %60, %61 : vector<2x512xf32>
    %63 = arith.negf %62 : vector<2x512xf32>
    %64 = math.exp %63 : vector<2x512xf32>
    %cst_14 = arith.constant 1.000000e+00 : f32
    %65 = vector.broadcast %cst_14 : f32 to vector<2x512xf32>
    %66 = arith.addf %65, %64 : vector<2x512xf32>
    %67 = arith.divf %65, %66 : vector<2x512xf32>
    %68 = math.tanh %62 : vector<2x512xf32>
    %69 = vector.extract_strided_slice %67 {offsets = [0, 0], sizes = [2, 128], strides = [1, 1]} : vector<2x512xf32> to vector<2x128xf32>
    %70 = vector.extract_strided_slice %67 {offsets = [0, 128], sizes = [2, 128], strides = [1, 1]} : vector<2x512xf32> to vector<2x128xf32>
    %71 = vector.extract_strided_slice %68 {offsets = [0, 256], sizes = [2, 128], strides = [1, 1]} : vector<2x512xf32> to vector<2x128xf32>
    %72 = vector.extract_strided_slice %67 {offsets = [0, 384], sizes = [2, 128], strides = [1, 1]} : vector<2x512xf32> to vector<2x128xf32>
    %73 = arith.mulf %70, %57 : vector<2x128xf32>
    %74 = arith.mulf %69, %71 : vector<2x128xf32>
    %75 = arith.addf %73, %74 : vector<2x128xf32>
    %76 = math.tanh %75 : vector<2x128xf32>
    %77 = arith.mulf %72, %76 : vector<2x128xf32>
    %78 = vector.extract_strided_slice %5 {offsets = [8, 0], sizes = [2, 512], strides = [1, 1]} : vector<16x512xf32> to vector<2x512xf32>
    %cst_15 = arith.constant dense<0.000000e+00> : vector<2x512xf32>
    %79 = tpu.matmul %77, %6, %cst_15 {dimension_numbers = #tpu.dot_dimension_numbers<[1], [0], [0], [1], [0, 0, 1, 1], [], []>} : vector<2x128xf32>, vector<128x512xf32>, vector<2x512xf32> -> vector<2x512xf32>
    %80 = arith.addf %78, %79 : vector<2x512xf32>
    %81 = arith.negf %80 : vector<2x512xf32>
    %82 = math.exp %81 : vector<2x512xf32>
    %cst_16 = arith.constant 1.000000e+00 : f32
    %83 = vector.broadcast %cst_16 : f32 to vector<2x512xf32>
    %84 = arith.addf %83, %82 : vector<2x512xf32>
    %85 = arith.divf %83, %84 : vector<2x512xf32>
    %86 = math.tanh %80 : vector<2x512xf32>
    %87 = vector.extract_strided_slice %85 {offsets = [0, 0], sizes = [2, 128], strides = [1, 1]} : vector<2x512xf32> to vector<2x128xf32>
    %88 = vector.extract_strided_slice %85 {offsets = [0, 128], sizes = [2, 128], strides = [1, 1]} : vector<2x512xf32> to vector<2x128xf32>
    %89 = vector.extract_strided_slice %86 {offsets = [0, 256], sizes = [2, 128], strides = [1, 1]} : vector<2x512xf32> to vector<2x128xf32>
    %90 = vector.extract_strided_slice %85 {offsets = [0, 384], sizes = [2, 128], strides = [1, 1]} : vector<2x512xf32> to vector<2x128xf32>
    %91 = arith.mulf %88, %75 : vector<2x128xf32>
    %92 = arith.mulf %87, %89 : vector<2x128xf32>
    %93 = arith.addf %91, %92 : vector<2x128xf32>
    %94 = math.tanh %93 : vector<2x128xf32>
    %95 = arith.mulf %90, %94 : vector<2x128xf32>
    %96 = vector.extract_strided_slice %5 {offsets = [10, 0], sizes = [2, 512], strides = [1, 1]} : vector<16x512xf32> to vector<2x512xf32>
    %cst_17 = arith.constant dense<0.000000e+00> : vector<2x512xf32>
    %97 = tpu.matmul %95, %6, %cst_17 {dimension_numbers = #tpu.dot_dimension_numbers<[1], [0], [0], [1], [0, 0, 1, 1], [], []>} : vector<2x128xf32>, vector<128x512xf32>, vector<2x512xf32> -> vector<2x512xf32>
    %98 = arith.addf %96, %97 : vector<2x512xf32>
    %99 = arith.negf %98 : vector<2x512xf32>
    %100 = math.exp %99 : vector<2x512xf32>
    %cst_18 = arith.constant 1.000000e+00 : f32
    %101 = vector.broadcast %cst_18 : f32 to vector<2x512xf32>
    %102 = arith.addf %101, %100 : vector<2x512xf32>
    %103 = arith.divf %101, %102 : vector<2x512xf32>
    %104 = math.tanh %98 : vector<2x512xf32>
    %105 = vector.extract_strided_slice %103 {offsets = [0, 0], sizes = [2, 128], strides = [1, 1]} : vector<2x512xf32> to vector<2x128xf32>
    %106 = vector.extract_strided_slice %103 {offsets = [0, 128], sizes = [2, 128], strides = [1, 1]} : vector<2x512xf32> to vector<2x128xf32>
    %107 = vector.extract_strided_slice %104 {offsets = [0, 256], sizes = [2, 128], strides = [1, 1]} : vector<2x512xf32> to vector<2x128xf32>
    %108 = vector.extract_strided_slice %103 {offsets = [0, 384], sizes = [2, 128], strides = [1, 1]} : vector<2x512xf32> to vector<2x128xf32>
    %109 = arith.mulf %106, %93 : vector<2x128xf32>
    %110 = arith.mulf %105, %107 : vector<2x128xf32>
    %111 = arith.addf %109, %110 : vector<2x128xf32>
    %112 = math.tanh %111 : vector<2x128xf32>
    %113 = arith.mulf %108, %112 : vector<2x128xf32>
    %114 = vector.extract_strided_slice %5 {offsets = [12, 0], sizes = [2, 512], strides = [1, 1]} : vector<16x512xf32> to vector<2x512xf32>
    %cst_19 = arith.constant dense<0.000000e+00> : vector<2x512xf32>
    %115 = tpu.matmul %113, %6, %cst_19 {dimension_numbers = #tpu.dot_dimension_numbers<[1], [0], [0], [1], [0, 0, 1, 1], [], []>} : vector<2x128xf32>, vector<128x512xf32>, vector<2x512xf32> -> vector<2x512xf32>
    %116 = arith.addf %114, %115 : vector<2x512xf32>
    %117 = arith.negf %116 : vector<2x512xf32>
    %118 = math.exp %117 : vector<2x512xf32>
    %cst_20 = arith.constant 1.000000e+00 : f32
    %119 = vector.broadcast %cst_20 : f32 to vector<2x512xf32>
    %120 = arith.addf %119, %118 : vector<2x512xf32>
    %121 = arith.divf %119, %120 : vector<2x512xf32>
    %122 = math.tanh %116 : vector<2x512xf32>
    %123 = vector.extract_strided_slice %121 {offsets = [0, 0], sizes = [2, 128], strides = [1, 1]} : vector<2x512xf32> to vector<2x128xf32>
    %124 = vector.extract_strided_slice %121 {offsets = [0, 128], sizes = [2, 128], strides = [1, 1]} : vector<2x512xf32> to vector<2x128xf32>
    %125 = vector.extract_strided_slice %122 {offsets = [0, 256], sizes = [2, 128], strides = [1, 1]} : vector<2x512xf32> to vector<2x128xf32>
    %126 = vector.extract_strided_slice %121 {offsets = [0, 384], sizes = [2, 128], strides = [1, 1]} : vector<2x512xf32> to vector<2x128xf32>
    %127 = arith.mulf %124, %111 : vector<2x128xf32>
    %128 = arith.mulf %123, %125 : vector<2x128xf32>
    %129 = arith.addf %127, %128 : vector<2x128xf32>
    %130 = math.tanh %129 : vector<2x128xf32>
    %131 = arith.mulf %126, %130 : vector<2x128xf32>
    %132 = vector.extract_strided_slice %5 {offsets = [14, 0], sizes = [2, 512], strides = [1, 1]} : vector<16x512xf32> to vector<2x512xf32>
    %cst_21 = arith.constant dense<0.000000e+00> : vector<2x512xf32>
    %133 = tpu.matmul %131, %6, %cst_21 {dimension_numbers = #tpu.dot_dimension_numbers<[1], [0], [0], [1], [0, 0, 1, 1], [], []>} : vector<2x128xf32>, vector<128x512xf32>, vector<2x512xf32> -> vector<2x512xf32>
    %134 = arith.addf %132, %133 : vector<2x512xf32>
    %135 = arith.negf %134 : vector<2x512xf32>
    %136 = math.exp %135 : vector<2x512xf32>
    %cst_22 = arith.constant 1.000000e+00 : f32
    %137 = vector.broadcast %cst_22 : f32 to vector<2x512xf32>
    %138 = arith.addf %137, %136 : vector<2x512xf32>
    %139 = arith.divf %137, %138 : vector<2x512xf32>
    %140 = math.tanh %134 : vector<2x512xf32>
    %141 = vector.extract_strided_slice %139 {offsets = [0, 0], sizes = [2, 128], strides = [1, 1]} : vector<2x512xf32> to vector<2x128xf32>
    %142 = vector.extract_strided_slice %139 {offsets = [0, 128], sizes = [2, 128], strides = [1, 1]} : vector<2x512xf32> to vector<2x128xf32>
    %143 = vector.extract_strided_slice %140 {offsets = [0, 256], sizes = [2, 128], strides = [1, 1]} : vector<2x512xf32> to vector<2x128xf32>
    %144 = vector.extract_strided_slice %139 {offsets = [0, 384], sizes = [2, 128], strides = [1, 1]} : vector<2x512xf32> to vector<2x128xf32>
    %145 = arith.mulf %142, %129 : vector<2x128xf32>
    %146 = arith.mulf %141, %143 : vector<2x128xf32>
    %147 = arith.addf %145, %146 : vector<2x128xf32>
    %148 = math.tanh %147 : vector<2x128xf32>
    %149 = arith.mulf %144, %148 : vector<2x128xf32>
    %150 = tpu.concatenate %23, %41, %59, %77, %95, %113, %131, %149 in 0 : vector<2x128xf32>, vector<2x128xf32>, vector<2x128xf32>, vector<2x128xf32>, vector<2x128xf32>, vector<2x128xf32>, vector<2x128xf32>, vector<2x128xf32> -> vector<16x128xf32>
    %c0_23 = arith.constant 0 : index
    %c0_24 = arith.constant 0 : index
    %151 = vector.load %arg5[%c0_23, %c0_24] : memref<128x256xf32, #tpu.memory_space<vmem>>, vector<128x256xf32>
    %cst_25 = arith.constant dense<0.000000e+00> : vector<16x256xf32>
    %152 = tpu.matmul %150, %151, %cst_25 {dimension_numbers = #tpu.dot_dimension_numbers<[1], [0], [0], [1], [0, 0, 1, 1], [], []>} : vector<16x128xf32>, vector<128x256xf32>, vector<16x256xf32> -> vector<16x256xf32>
    %c0_26 = arith.constant 0 : index
    %c0_27 = arith.constant 0 : index
    %153 = vector.load %arg6[%c0_26, %c0_27] : memref<1x256xf32, #tpu.memory_space<vmem>>, vector<1x256xf32>
    %154 = vector.broadcast %153 : vector<1x256xf32> to vector<16x256xf32>
    %155 = arith.addf %152, %154 : vector<16x256xf32>
    %156 = vector.extract_strided_slice %155 {offsets = [0, 0], sizes = [16, 128], strides = [1, 1]} : vector<16x256xf32> to vector<16x128xf32>
    %cst_28 = arith.constant dense<0xFF800000> : vector<16xf32>
    %157 = vector.multi_reduction <maximumf>, %156, %cst_28 [1] : vector<16x128xf32> to vector<16xf32>
    %158 = vector.shape_cast %157 : vector<16xf32> to vector<16x1xf32>
    %159 = vector.broadcast %158 : vector<16x1xf32> to vector<16x128xf32>
    %160 = arith.subf %156, %159 : vector<16x128xf32>
    %161 = math.exp %160 : vector<16x128xf32>
    %cst_29 = arith.constant dense<0.000000e+00> : vector<16xf32>
    %162 = vector.multi_reduction <add>, %161, %cst_29 [1] : vector<16x128xf32> to vector<16xf32>
    %163 = vector.shape_cast %162 : vector<16xf32> to vector<16x1xf32>
    %164 = tpu.reciprocal %163 {approx = true} : vector<16x1xf32> -> vector<16x1xf32>
    %165 = arith.mulf %163, %164 : vector<16x1xf32>
    %cst_30 = arith.constant 2.000000e+00 : f32
    %166 = vector.broadcast %cst_30 : f32 to vector<16x1xf32>
    %167 = arith.subf %166, %165 : vector<16x1xf32>
    %168 = arith.mulf %164, %167 : vector<16x1xf32>
    %169 = vector.broadcast %168 : vector<16x1xf32> to vector<16x128xf32>
    %170 = arith.mulf %161, %169 : vector<16x128xf32>
    %171 = vector.extract_strided_slice %155 {offsets = [0, 128], sizes = [16, 128], strides = [1, 1]} : vector<16x256xf32> to vector<16x128xf32>
    %cst_31 = arith.constant dense<0xFF800000> : vector<16xf32>
    %172 = vector.multi_reduction <maximumf>, %171, %cst_31 [1] : vector<16x128xf32> to vector<16xf32>
    %173 = vector.shape_cast %172 : vector<16xf32> to vector<16x1xf32>
    %174 = vector.broadcast %173 : vector<16x1xf32> to vector<16x128xf32>
    %175 = arith.subf %171, %174 : vector<16x128xf32>
    %176 = math.exp %175 : vector<16x128xf32>
    %cst_32 = arith.constant dense<0.000000e+00> : vector<16xf32>
    %177 = vector.multi_reduction <add>, %176, %cst_32 [1] : vector<16x128xf32> to vector<16xf32>
    %178 = vector.shape_cast %177 : vector<16xf32> to vector<16x1xf32>
    %179 = tpu.reciprocal %178 {approx = true} : vector<16x1xf32> -> vector<16x1xf32>
    %180 = arith.mulf %178, %179 : vector<16x1xf32>
    %cst_33 = arith.constant 2.000000e+00 : f32
    %181 = vector.broadcast %cst_33 : f32 to vector<16x1xf32>
    %182 = arith.subf %181, %180 : vector<16x1xf32>
    %183 = arith.mulf %179, %182 : vector<16x1xf32>
    %184 = vector.broadcast %183 : vector<16x1xf32> to vector<16x128xf32>
    %185 = arith.mulf %176, %184 : vector<16x128xf32>
    %c0_34 = arith.constant 0 : index
    %c0_35 = arith.constant 0 : index
    %186 = vector.load %arg4[%c0_34, %c0_35] : memref<128x128xf32, #tpu.memory_space<vmem>>, vector<128x128xf32>
    %cst_36 = arith.constant dense<0.000000e+00> : vector<16x128xf32>
    %187 = tpu.matmul %170, %186, %cst_36 {dimension_numbers = #tpu.dot_dimension_numbers<[1], [0], [0], [1], [0, 0, 1, 1], [], []>} : vector<16x128xf32>, vector<128x128xf32>, vector<16x128xf32> -> vector<16x128xf32>
    %cst_37 = arith.constant dense<0.000000e+00> : vector<128x128xf32>
    %188 = tpu.matmul %185, %150, %cst_37 {dimension_numbers = #tpu.dot_dimension_numbers<[0], [0], [1], [1], [0, 1, 1, 1], [], []>} : vector<16x128xf32>, vector<16x128xf32>, vector<128x128xf32> -> vector<128x128xf32>
    %189 = arith.addf %187, %150 : vector<16x128xf32>
    %c0_38 = arith.constant 0 : index
    %c0_39 = arith.constant 0 : index
    %190 = vector.load %arg7[%c0_38, %c0_39] : memref<16x128xf32, #tpu.memory_space<vmem>>, vector<16x128xf32>
    tpu.vector_store %arg7[%c0_38, %c0_39], %189 {strides = array<i32>} : memref<16x128xf32, #tpu.memory_space<vmem>>, vector<16x128xf32>,
    %c0_40 = arith.constant 0 : index
    %c0_41 = arith.constant 0 : index
    %191 = vector.load %arg4[%c0_40, %c0_41] : memref<128x128xf32, #tpu.memory_space<vmem>>, vector<128x128xf32>
    %192 = arith.addf %191, %188 : vector<128x128xf32>
    %c0_42 = arith.constant 0 : index
    %c0_43 = arith.constant 0 : index
    %193 = vector.load %arg8[%c0_42, %c0_43] : memref<128x128xf32, #tpu.memory_space<vmem>>, vector<128x128xf32>
    tpu.vector_store %arg8[%c0_42, %c0_43], %192 {strides = array<i32>} : memref<128x128xf32, #tpu.memory_space<vmem>>, vector<128x128xf32>,
    return
  }
}

</mosaic_0001>

<llo_original>
// kernel: tpu_custom_call.1
$region0: #{tpu_custom_call.1}
  #allocation0 [shape = 'u32[]', space=smem, size = 0x4, offset = 0x4, fixed_abs, tag = 'smem constant byte address 0x4 - core index']
  #allocation1 [shape = 'u32[144,128]{1,0:T(1,128)}', space=vmem, size = 0x12000, scoped, tag = 'internal scratch']
  %s0 = inlined_call_operand.hbm [shape: f32[16,16], index: 0, kind: input, shape index: {}]
  %s1 = inlined_call_operand.hbm [shape: f32[16,512], index: 1, kind: input, shape index: {}]
  %s2 = inlined_call_operand.hbm [shape: f32[128,512], index: 2, kind: input, shape index: {}]
  %s3 = inlined_call_operand.vmem [shape: f32[1,512], index: 3, kind: input, shape index: {}]
  %s4 = inlined_call_operand.hbm [shape: f32[128,128], index: 4, kind: input, shape index: {}]
  %s5 = inlined_call_operand.hbm [shape: f32[128,256], index: 5, kind: input, shape index: {}]
  %s6 = inlined_call_operand.vmem [shape: f32[1,256], index: 6, kind: input, shape index: {}]
  %s7 = inlined_call_operand.hbm [shape: f32[16,128], index: 7, kind: output, shape index: {0}]
  %s8 = inlined_call_operand.hbm [shape: f32[128,128], index: 8, kind: output, shape index: {1}]
  %9 = xla_tuple %s7, %s8
  %s10 = sld [smem:[#allocation0]]
  $region66: #{tpu_custom_call.1} parent=0
    _
  %s12 = ssub.s32 1, %s10
  %s13 = scalar_select 0, %s12, %s10
  $region1: #{tpu_custom_call.1} parent=0
    #allocation2 [shape = 'u8[8192]{0}', space=vmem, size = 0x2000, scoped, tag = 'input window, operand 0, single buffered']
    #allocation3 [shape = 's32[1]{0}', space=sflag, size = 0x4, scoped, tag = 'scoped memory for tpu_custom_call.1']
    #allocation4 [shape = 's32[1]{0}', space=sflag, size = 0x4, scoped, tag = 'scoped memory for tpu_custom_call.1']
    #allocation5 [shape = 'u8[32768]{0}', space=vmem, size = 0x8000, scoped, tag = 'input window, operand 1, single buffered']
    #allocation6 [shape = 's32[1]{0}', space=sflag, size = 0x4, scoped, tag = 'scoped memory for tpu_custom_call.1']
    #allocation7 [shape = 'u8[262144]{0}', space=vmem, size = 0x40000, scoped, tag = 'input window, operand 2, single buffered']
    #allocation8 [shape = 'u8[65536]{0}', space=vmem, size = 0x10000, scoped, tag = 'input window, operand 4, single buffered']
    #allocation9 [shape = 's32[1]{0}', space=sflag, size = 0x4, scoped, tag = 'scoped memory for tpu_custom_call.1']
    #allocation10 [shape = 'u8[131072]{0}', space=vmem, size = 0x20000, scoped, tag = 'input window, operand 5, single buffered']
    #allocation11 [shape = 'u8[8192]{0}', space=vmem, size = 0x2000, scoped, tag = 'output window, operand 0, single buffered']
    #allocation12 [shape = 'u8[65536]{0}', space=vmem, size = 0x10000, scoped, tag = 'output window, operand 1, single buffered']
    #allocation13 [shape = 's32[1]{0}', space=sflag, size = 0x4, scoped, tag = 'scoped memory for tpu_custom_call.1']
    %14 = vsyncpa [#allocation3], 0
    %15 = vsyncpa [#allocation6], 0
    %16 = vsyncpa [#allocation9], 0
    %17 = vsyncpa [#allocation4], 0
    %18 = vsyncpa [#allocation13], 0
    // Predicated region
    $region2: #{tpu_custom_call.1} parent=1 // pred_check
      _
    $region3: #{tpu_custom_call.1} parent=1 // pred_check_branch
      %20 = sbr.rel (0) target = $region5
    $region4: #{tpu_custom_call.1} parent=1 // pred_region
      %s22 = ssub.s32 256, 256
      %23 = vsyncadd [#allocation3], %s22
      %s24 = sshll.u32 [#allocation2], 4
      %s25 = int_to_ptr.vmem [resolvable:$true] %s24
      %30 = dma.hbm_to_vmem [thread:$0]  %s0, 256, %s25, [#allocation3], 128, 128, 8
    $region5: #{tpu_custom_call.1} parent=1 // pred_fallthru
      _
    // Predicated region
    $region6: #{tpu_custom_call.1} parent=1 // pred_check
      _
    $region7: #{tpu_custom_call.1} parent=1 // pred_check_branch
      %32 = sbr.rel (0) target = $region9
    $region8: #{tpu_custom_call.1} parent=1 // pred_region
      %s34 = ssub.s32 1024, 1024
      %35 = vsyncadd [#allocation6], %s34
      %s36 = sshll.u32 [#allocation5], 4
      %s37 = int_to_ptr.vmem [resolvable:$true] %s36
      %42 = dma.hbm_to_vmem [thread:$0]  %s1, 1024, %s37, [#allocation6], 512, 512, 32
    $region9: #{tpu_custom_call.1} parent=1 // pred_fallthru
      _
    // Predicated region
    $region10: #{tpu_custom_call.1} parent=1 // pred_check
      _
    $region11: #{tpu_custom_call.1} parent=1 // pred_check_branch
      %44 = sbr.rel (0) target = $region13
    $region12: #{tpu_custom_call.1} parent=1 // pred_region
      %s46 = ssub.s32 8192, 8192
      %47 = vsyncadd [#allocation6], %s46
      %s48 = sshll.u32 [#allocation7], 4
      %s49 = int_to_ptr.vmem [resolvable:$true] %s48
      %54 = dma.hbm_to_vmem [thread:$0]  %s2, 8192, %s49, [#allocation6], 512, 512, 32
    $region13: #{tpu_custom_call.1} parent=1 // pred_fallthru
      _
    // Predicated region
    $region14: #{tpu_custom_call.1} parent=1 // pred_check
      _
    $region15: #{tpu_custom_call.1} parent=1 // pred_check_branch
      %56 = sbr.rel (0) target = $region17
    $region16: #{tpu_custom_call.1} parent=1 // pred_region
      _
    $region17: #{tpu_custom_call.1} parent=1 // pred_fallthru
      _
    // Predicated region
    $region18: #{tpu_custom_call.1} parent=1 // pred_check
      _
    $region19: #{tpu_custom_call.1} parent=1 // pred_check_branch
      %58 = sbr.rel (0) target = $region21
    $region20: #{tpu_custom_call.1} parent=1 // pred_region
      %s60 = ssub.s32 2048, 2048
      %61 = vsyncadd [#allocation9], %s60
      %s62 = sshll.u32 [#allocation8], 4
      %s63 = int_to_ptr.vmem [resolvable:$true] %s62
      %68 = dma.hbm_to_vmem [thread:$0]  %s4, 2048, %s63, [#allocation9], 128, 128, 8
    $region21: #{tpu_custom_call.1} parent=1 // pred_fallthru
      _
    // Predicated region
    $region22: #{tpu_custom_call.1} parent=1 // pred_check
      _
    $region23: #{tpu_custom_call.1} parent=1 // pred_check_branch
      %70 = sbr.rel (0) target = $region25
    $region24: #{tpu_custom_call.1} parent=1 // pred_region
      %s72 = ssub.s32 4096, 4096
      %73 = vsyncadd [#allocation9], %s72
      %s74 = sshll.u32 [#allocation10], 4
      %s75 = int_to_ptr.vmem [resolvable:$true] %s74
      %80 = dma.hbm_to_vmem [thread:$0]  %s5, 4096, %s75, [#allocation9], 256, 256, 16
    $region25: #{tpu_custom_call.1} parent=1 // pred_fallthru
      _
    // Predicated region
    $region26: #{tpu_custom_call.1} parent=1 // pred_check
      _
    $region27: #{tpu_custom_call.1} parent=1 // pred_check_branch
      %82 = sbr.rel (0) target = $region29
    $region28: #{tpu_custom_call.1} parent=1 // pred_region
      _
    $region29: #{tpu_custom_call.1} parent=1 // pred_fallthru
      _
    // Predicated region
    $region30: #{tpu_custom_call.1} parent=1 // pred_check
      _
    $region31: #{tpu_custom_call.1} parent=1 // pred_check_branch
      %84 = sbr.rel (0) target = $region33
    $region32: #{tpu_custom_call.1} parent=1 // pred_region
      %85 = dma.done [#allocation3], 256
    $region33: #{tpu_custom_call.1} parent=1 // pred_fallthru
      _
    // Predicated region
    $region34: #{tpu_custom_call.1} parent=1 // pred_check
      _
    $region35: #{tpu_custom_call.1} parent=1 // pred_check_branch
      %87 = sbr.rel (0) target = $region37
    $region36: #{tpu_custom_call.1} parent=1 // pred_region
      %88 = dma.done [#allocation6], 1024
    $region37: #{tpu_custom_call.1} parent=1 // pred_fallthru
      _
    // Predicated region
    $region38: #{tpu_custom_call.1} parent=1 // pred_check
      _
    $region39: #{tpu_custom_call.1} parent=1 // pred_check_branch
      %90 = sbr.rel (0) target = $region41
    $region40: #{tpu_custom_call.1} parent=1 // pred_region
      %91 = dma.done [#allocation6], 8192
    $region41: #{tpu_custom_call.1} parent=1 // pred_fallthru
      _
    // Predicated region
    $region42: #{tpu_custom_call.1} parent=1 // pred_check
      _
    $region43: #{tpu_custom_call.1} parent=1 // pred_check_branch
      %93 = sbr.rel (0) target = $region45
    $region44: #{tpu_custom_call.1} parent=1 // pred_region
      %94 = dma.done [#allocation9], 2048
    $region45: #{tpu_custom_call.1} parent=1 // pred_fallthru
      _
    // Predicated region
    $region46: #{tpu_custom_call.1} parent=1 // pred_check
      _
    $region47: #{tpu_custom_call.1} parent=1 // pred_check_branch
      %96 = sbr.rel (0) target = $region49
    $region48: #{tpu_custom_call.1} parent=1 // pred_region
      %97 = dma.done [#allocation9], 4096
    $region49: #{tpu_custom_call.1} parent=1 // pred_fallthru
      _
    %v98 = vld [vmem:[#allocation2] sm:$0xff]
    %v99 = vld [vmem:[#allocation2 + $0x8] sm:$0xff]
    %v100 = vld [vmem:[#allocation5] sm:$0xff]
    %v101 = vld [vmem:[#allocation5 + $0x8] sm:$0xff]
    %v102 = vld [vmem:[#allocation5 + $0x10] sm:$0xff]
    %v103 = vld [vmem:[#allocation5 + $0x18] sm:$0xff]
    %v104 = vld [vmem:[#allocation5 + $0x20] sm:$0xff]
    %v105 = vld [vmem:[#allocation5 + $0x28] sm:$0xff]
    %v106 = vld [vmem:[#allocation5 + $0x30] sm:$0xff]
    %v107 = vld [vmem:[#allocation5 + $0x38] sm:$0xff]
    %v108 = vld [vmem:[%s3] sm:$0xf]
    %v110 = vlaneseq
    %v111 = vshrl.u32 %v110, 7
    %v112 = vsub.s32 0, %v111
    %v113 = vrot.slane %v108, %v112
    %v114 = vlaneseq
    %v115 = vshrl.u32 %v114, 7
    %v116 = vsub.s32 1, %v115
    %v117 = vrot.slane %v108, %v116
    %v118 = vlaneseq
    %v119 = vshrl.u32 %v118, 7
    %v120 = vsub.s32 2, %v119
    %v121 = vrot.slane %v108, %v120
    %v122 = vlaneseq
    %v123 = vshrl.u32 %v122, 7
    %v124 = vsub.s32 3, %v123
    %v125 = vrot.slane %v108, %v124
    %vm130 = vcmask 130048
    %v132 = vsel %vm130, %v98, 0
    %v135 = vsel %vm130, %v99, 0
    %137 = vmatprep.subr.mxu0 %v101
    %138 = vmatpush1.msra.mxu0 %v100
    %139 = vmatprep.subr.mxu0 %v105
    %140 = vmatpush1.msra.mxu0 %v104
    %141 = vmatprep.subr.mxu0 0.0
    %142 = vmatpush1.msra.mxu0 0.0
    %143 = vmatprep.subr.mxu0 0.0
    %144 = vmatpush1.msra.mxu0 0.0
    %145 = vmatprep.subr.mxu0 0.0
    %146 = vmatpush1.msra.mxu0 0.0
    %147 = vmatprep.subr.mxu0 0.0
    %148 = vmatpush1.msra.mxu0 0.0
    %149 = vmatprep.subr.mxu0 0.0
    %150 = vmatpush1.msra.mxu0 0.0
    %151 = vmatprep.subr.mxu0 0.0
    %152 = vmatpush1.msra.mxu0 0.0
    %153 = vmatprep.subr.mxu0 0.0
    %154 = vmatpush1.msra.mxu0 0.0
    %155 = vmatprep.subr.mxu0 0.0
    %156 = vmatpush1.msra.mxu0 0.0
    %157 = vmatprep.subr.mxu0 0.0
    %158 = vmatpush1.msra.mxu0 0.0
    %159 = vmatprep.subr.mxu0 0.0
    %160 = vmatpush1.msra.mxu0 0.0
    %161 = vmatprep.subr.mxu0 0.0
    %162 = vmatpush1.msra.mxu0 0.0
    %163 = vmatprep.subr.mxu0 0.0
    %164 = vmatpush1.msra.mxu0 0.0
    %165 = vmatprep.subr.mxu0 0.0
    %166 = vmatpush1.msra.mxu0 0.0
    %167 = vmatprep.subr.mxu0 0.0
    %168 = vmatpush1.msra.mxu0 0.0
    %169 = vmatprep.subr.mxu0 0.0
    %170 = vmatpush1.msra.mxu0 0.0
    %171 = vmatprep.subr.mxu0 0.0
    %172 = vmatpush1.msra.mxu0 0.0
    %173 = vmatprep.subr.mxu0 0.0
    %174 = vmatpush1.msra.mxu0 0.0
    %175 = vmatprep.subr.mxu0 0.0
    %176 = vmatpush1.msra.mxu0 0.0
    %177 = vmatprep.subr.mxu0 0.0
    %178 = vmatpush1.msra.mxu0 0.0
    %179 = vmatprep.subr.mxu0 0.0
    %180 = vmatpush1.msra.mxu0 0.0
    %181 = vmatprep.subr.mxu0 0.0
    %182 = vmatpush1.msra.mxu0 0.0
    %183 = vmatprep.subr.mxu0 0.0
    %184 = vmatpush1.msra.mxu0 0.0
    %185 = vmatprep.subr.mxu0 0.0
    %186 = vmatpush1.msra.mxu0 0.0
    %187 = vmatprep.subr.mxu0 0.0
    %188 = vmatpush1.msra.mxu0 0.0
    %189 = vmatprep.subr.mxu0 0.0
    %190 = vmatpush1.msra.mxu0 0.0
    %191 = vmatprep.subr.mxu0 0.0
    %192 = vmatpush1.msra.mxu0 0.0
    %193 = vmatprep.subr.mxu0 0.0
    %194 = vmatpush1.msra.mxu0 0.0
    %195 = vmatprep.subr.mxu0 0.0
    %196 = vmatpush1.msra.mxu0 0.0
    %197 = vmatprep.subr.mxu0 0.0
    %198 = vmatpush1.msra.mxu0 0.0
    %199 = vmatprep.subr.mxu0 0.0
    %200 = vmatpush1.msra.mxu0 0.0
    %201 = vmatprep.mubr.f32.mxu0 0.0
    %202 = vmatmul.mubr.f32.gmra.mrb[0].mxu0 %v132
    %v203 = vpop.f32.mrb[0].mxu0
    %v204 = vadd.f32 %v113, %v203
    %v205 = vpop.f32.mrb[0].mxu0
    %v206 = vadd.f32 %v117, %v205
    %207 = vmatprep.mubr.f32.mxu0 0.0
    %208 = vmatmul.mubr.f32.gmra.mrb[0].mxu0 %v135
    %v209 = vpop.f32.mrb[0].mxu0
    %v210 = vadd.f32 %v113, %v209
    %v211 = vpop.f32.mrb[0].mxu0
    %v212 = vadd.f32 %v117, %v211
    %213 = vdwg.mxu0
    %214 = vmatprep.subr.mxu0 %v103
    %215 = vmatpush1.msra.mxu0 %v102
    %216 = vmatprep.subr.mxu0 %v107
    %217 = vmatpush1.msra.mxu0 %v106
    %218 = vmatprep.subr.mxu0 0.0
    %219 = vmatpush1.msra.mxu0 0.0
    %220 = vmatprep.subr.mxu0 0.0
    %221 = vmatpush1.msra.mxu0 0.0
    %222 = vmatprep.subr.mxu0 0.0
    %223 = vmatpush1.msra.mxu0 0.0
    %224 = vmatprep.subr.mxu0 0.0
    %225 = vmatpush1.msra.mxu0 0.0
    %226 = vmatprep.subr.mxu0 0.0
    %227 = vmatpush1.msra.mxu0 0.0
    %228 = vmatprep.subr.mxu0 0.0
    %229 = vmatpush1.msra.mxu0 0.0
    %230 = vmatprep.subr.mxu0 0.0
    %231 = vmatpush1.msra.mxu0 0.0
    %232 = vmatprep.subr.mxu0 0.0
    %233 = vmatpush1.msra.mxu0 0.0
    %234 = vmatprep.subr.mxu0 0.0
    %235 = vmatpush1.msra.mxu0 0.0
    %236 = vmatprep.subr.mxu0 0.0
    %237 = vmatpush1.msra.mxu0 0.0
    %238 = vmatprep.subr.mxu0 0.0
    %239 = vmatpush1.msra.mxu0 0.0
    %240 = vmatprep.subr.mxu0 0.0
    %241 = vmatpush1.msra.mxu0 0.0
    %242 = vmatprep.subr.mxu0 0.0
    %243 = vmatpush1.msra.mxu0 0.0
    %244 = vmatprep.subr.mxu0 0.0
    %245 = vmatpush1.msra.mxu0 0.0
    %246 = vmatprep.subr.mxu0 0.0
    %247 = vmatpush1.msra.mxu0 0.0
    %248 = vmatprep.subr.mxu0 0.0
    %249 = vmatpush1.msra.mxu0 0.0
    %250 = vmatprep.subr.mxu0 0.0
    %251 = vmatpush1.msra.mxu0 0.0
    %252 = vmatprep.subr.mxu0 0.0
    %253 = vmatpush1.msra.mxu0 0.0
    %254 = vmatprep.subr.mxu0 0.0
    %255 = vmatpush1.msra.mxu0 0.0
    %256 = vmatprep.subr.mxu0 0.0
    %257 = vmatpush1.msra.mxu0 0.0
    %258 = vmatprep.subr.mxu0 0.0
    %259 = vmatpush1.msra.mxu0 0.0
    %260 = vmatprep.subr.mxu0 0.0
    %261 = vmatpush1.msra.mxu0 0.0
    %262 = vmatprep.subr.mxu0 0.0
    %263 = vmatpush1.msra.mxu0 0.0
    %264 = vmatprep.subr.mxu0 0.0
    %265 = vmatpush1.msra.mxu0 0.0
    %266 = vmatprep.subr.mxu0 0.0
    %267 = vmatpush1.msra.mxu0 0.0
    %268 = vmatprep.subr.mxu0 0.0
    %269 = vmatpush1.msra.mxu0 0.0
    %270 = vmatprep.subr.mxu0 0.0
    %271 = vmatpush1.msra.mxu0 0.0
    %272 = vmatprep.subr.mxu0 0.0
    %273 = vmatpush1.msra.mxu0 0.0
    %274 = vmatprep.subr.mxu0 0.0
    %275 = vmatpush1.msra.mxu0 0.0
    %276 = vmatprep.subr.mxu0 0.0
    %277 = vmatpush1.msra.mxu0 0.0
    %278 = vmatprep.mubr.f32.mxu0 0.0
    %279 = vmatmul.mubr.f32.gmra.mrb[0].mxu0 %v132
    %v280 = vpop.f32.mrb[0].mxu0
    %v281 = vadd.f32 %v121, %v280
    %v282 = vpop.f32.mrb[0].mxu0
    %v283 = vadd.f32 %v125, %v282
    %284 = vmatprep.mubr.f32.mxu0 0.0
    %285 = vmatmul.mubr.f32.gmra.mrb[0].mxu0 %v135
    %v286 = vpop.f32.mrb[0].mxu0
    %v287 = vadd.f32 %v121, %v286
    %v288 = vpop.f32.mrb[0].mxu0
    %v289 = vadd.f32 %v125, %v288
    %290 = vdwg.mxu0
    %v291 = vld [vmem:[#allocation7] sm:$0xff]
    %v292 = vld [vmem:[#allocation7 + $0x8] sm:$0xff]
    %v293 = vld [vmem:[#allocation7 + $0x10] sm:$0xff]
    %v294 = vld [vmem:[#allocation7 + $0x18] sm:$0xff]
    %v295 = vld [vmem:[#allocation7 + $0x20] sm:$0xff]
    %v296 = vld [vmem:[#allocation7 + $0x28] sm:$0xff]
    %v297 = vld [vmem:[#allocation7 + $0x30] sm:$0xff]
    %v298 = vld [vmem:[#allocation7 + $0x38] sm:$0xff]
    %v299 = vld [vmem:[#allocation7 + $0x40] sm:$0xff]
    %v300 = vld [vmem:[#allocation7 + $0x48] sm:$0xff]
    %v301 = vld [vmem:[#allocation7 + $0x50] sm:$0xff]
    %v302 = vld [vmem:[#allocation7 + $0x58] sm:$0xff]
    %v303 = vld [vmem:[#allocation7 + $0x60] sm:$0xff]
    %v304 = vld [vmem:[#allocation7 + $0x68] sm:$0xff]
    %v305 = vld [vmem:[#allocation7 + $0x70] sm:$0xff]
    %v306 = vld [vmem:[#allocation7 + $0x78] sm:$0xff]
    %v307 = vld [vmem:[#allocation7 + $0x80] sm:$0xff]
    %v308 = vld [vmem:[#allocation7 + $0x88] sm:$0xff]
    %v309 = vld [vmem:[#allocation7 + $0x90] sm:$0xff]
    %v310 = vld [vmem:[#allocation7 + $0x98] sm:$0xff]
    %v311 = vld [vmem:[#allocation7 + $0xa0] sm:$0xff]
    %v312 = vld [vmem:[#allocation7 + $0xa8] sm:$0xff]
    %v313 = vld [vmem:[#allocation7 + $0xb0] sm:$0xff]
    %v314 = vld [vmem:[#allocation7 + $0xb8] sm:$0xff]
    %v315 = vld [vmem:[#allocation7 + $0xc0] sm:$0xff]
    %v316 = vld [vmem:[#allocation7 + $0xc8] sm:$0xff]
    %v317 = vld [vmem:[#allocation7 + $0xd0] sm:$0xff]
    %v318 = vld [vmem:[#allocation7 + $0xd8] sm:$0xff]
    %v319 = vld [vmem:[#allocation7 + $0xe0] sm:$0xff]
    %v320 = vld [vmem:[#allocation7 + $0xe8] sm:$0xff]
    %v321 = vld [vmem:[#allocation7 + $0xf0] sm:$0xff]
    %v322 = vld [vmem:[#allocation7 + $0xf8] sm:$0xff]
    %v323 = vld [vmem:[#allocation7 + $0x100] sm:$0xff]
    %v324 = vld [vmem:[#allocation7 + $0x108] sm:$0xff]
    %v325 = vld [vmem:[#allocation7 + $0x110] sm:$0xff]
    %v326 = vld [vmem:[#allocation7 + $0x118] sm:$0xff]
    %v327 = vld [vmem:[#allocation7 + $0x120] sm:$0xff]
    %v328 = vld [vmem:[#allocation7 + $0x128] sm:$0xff]
    %v329 = vld [vmem:[#allocation7 + $0x130] sm:$0xff]
    %v330 = vld [vmem:[#allocation7 + $0x138] sm:$0xff]
    %v331 = vld [vmem:[#allocation7 + $0x140] sm:$0xff]
    %v332 = vld [vmem:[#allocation7 + $0x148] sm:$0xff]
    %v333 = vld [vmem:[#allocation7 + $0x150] sm:$0xff]
    %v334 = vld [vmem:[#allocation7 + $0x158] sm:$0xff]
    %v335 = vld [vmem:[#allocation7 + $0x160] sm:$0xff]
    %v336 = vld [vmem:[#allocation7 + $0x168] sm:$0xff]
    %v337 = vld [vmem:[#allocation7 + $0x170] sm:$0xff]
    %v338 = vld [vmem:[#allocation7 + $0x178] sm:$0xff]
    %v339 = vld [vmem:[#allocation7 + $0x180] sm:$0xff]
    %v340 = vld [vmem:[#allocation7 + $0x188] sm:$0xff]
    %v341 = vld [vmem:[#allocation7 + $0x190] sm:$0xff]
    %v342 = vld [vmem:[#allocation7 + $0x198] sm:$0xff]
    %v343 = vld [vmem:[#allocation7 + $0x1a0] sm:$0xff]
    %v344 = vld [vmem:[#allocation7 + $0x1a8] sm:$0xff]
    %v345 = vld [vmem:[#allocation7 + $0x1b0] sm:$0xff]
    %v346 = vld [vmem:[#allocation7 + $0x1b8] sm:$0xff]
    %v347 = vld [vmem:[#allocation7 + $0x1c0] sm:$0xff]
    %v348 = vld [vmem:[#allocation7 + $0x1c8] sm:$0xff]
    %v349 = vld [vmem:[#allocation7 + $0x1d0] sm:$0xff]
    %v350 = vld [vmem:[#allocation7 + $0x1d8] sm:$0xff]
    %v351 = vld [vmem:[#allocation7 + $0x1e0] sm:$0xff]
    %v352 = vld [vmem:[#allocation7 + $0x1e8] sm:$0xff]
    %v353 = vld [vmem:[#allocation7 + $0x1f0] sm:$0xff]
    %v354 = vld [vmem:[#allocation7 + $0x1f8] sm:$0xff]
    %v355 = vxor.u32 %v204, 2147483648
    %v356 = vxor.u32 %v206, 2147483648
    %v357 = vxor.u32 %v283, 2147483648
    %v358 = vmul.f32 %v355, 1.442695
    %v359 = vpow.pop %v358
    %v360 = vmul.f32 %v356, 1.442695
    %v361 = vpow.pop %v360
    %v362 = vmul.f32 %v357, 1.442695
    %v363 = vpow.pop %v362
    %v364 = vadd.f32 %v359, 1.0
    %v365 = vadd.f32 %v361, 1.0
    %v366 = vadd.f32 %v363, 1.0
    %v367 = vrcp.pop %v364
    %v368 = vmul.f32 1.0, %v367
    %v369 = vrcp.pop %v365
    %v370 = vmul.f32 1.0, %v369
    %v371 = vrcp.pop %v366
    %v372 = vmul.f32 1.0, %v371
    %v373 = vtanh.pop %v281
    %v374 = vmul.f32 %v370, 0.0
    %v375 = vmul.f32 %v368, %v373
    %v376 = vadd.f32 %v374, %v375
    %v377 = vtanh.pop %v376
    %v378 = vmul.f32 %v372, %v377
    %379 = vmatprep.subr.mxu0 %v292
    %380 = vmatpush1.msra.mxu0 %v291
    %381 = vmatprep.subr.mxu0 %v296
    %382 = vmatpush1.msra.mxu0 %v295
    %383 = vmatprep.subr.mxu0 %v300
    %384 = vmatpush1.msra.mxu0 %v299
    %385 = vmatprep.subr.mxu0 %v304
    %386 = vmatpush1.msra.mxu0 %v303
    %387 = vmatprep.subr.mxu0 %v308
    %388 = vmatpush1.msra.mxu0 %v307
    %389 = vmatprep.subr.mxu0 %v312
    %390 = vmatpush1.msra.mxu0 %v311
    %391 = vmatprep.subr.mxu0 %v316
    %392 = vmatpush1.msra.mxu0 %v315
    %393 = vmatprep.subr.mxu0 %v320
    %394 = vmatpush1.msra.mxu0 %v319
    %395 = vmatprep.subr.mxu0 %v324
    %396 = vmatpush1.msra.mxu0 %v323
    %397 = vmatprep.subr.mxu0 %v328
    %398 = vmatpush1.msra.mxu0 %v327
    %399 = vmatprep.subr.mxu0 %v332
    %400 = vmatpush1.msra.mxu0 %v331
    %401 = vmatprep.subr.mxu0 %v336
    %402 = vmatpush1.msra.mxu0 %v335
    %403 = vmatprep.subr.mxu0 %v340
    %404 = vmatpush1.msra.mxu0 %v339
    %405 = vmatprep.subr.mxu0 %v344
    %406 = vmatpush1.msra.mxu0 %v343
    %407 = vmatprep.subr.mxu0 %v348
    %408 = vmatpush1.msra.mxu0 %v347
    %409 = vmatprep.subr.mxu0 %v352
    %410 = vmatpush1.msra.mxu0 %v351
    %411 = vmatprep.subr.mxu0 0.0
    %412 = vmatpush1.msra.mxu0 0.0
    %413 = vmatprep.subr.mxu0 0.0
    %414 = vmatpush1.msra.mxu0 0.0
    %415 = vmatprep.subr.mxu0 0.0
    %416 = vmatpush1.msra.mxu0 0.0
    %417 = vmatprep.subr.mxu0 0.0
    %418 = vmatpush1.msra.mxu0 0.0
    %419 = vmatprep.subr.mxu0 0.0
    %420 = vmatpush1.msra.mxu0 0.0
    %421 = vmatprep.subr.mxu0 0.0
    %422 = vmatpush1.msra.mxu0 0.0
    %423 = vmatprep.subr.mxu0 0.0
    %424 = vmatpush1.msra.mxu0 0.0
    %425 = vmatprep.subr.mxu0 0.0
    %426 = vmatpush1.msra.mxu0 0.0
    %427 = vmatprep.subr.mxu0 0.0
    %428 = vmatpush1.msra.mxu0 0.0
    %429 = vmatprep.subr.mxu0 0.0
    %430 = vmatpush1.msra.mxu0 0.0
    %431 = vmatprep.subr.mxu0 0.0
    %432 = vmatpush1.msra.mxu0 0.0
    %433 = vmatprep.subr.mxu0 0.0
    %434 = vmatpush1.msra.mxu0 0.0
    %435 = vmatprep.subr.mxu0 0.0
    %436 = vmatpush1.msra.mxu0 0.0
    %437 = vmatprep.subr.mxu0 0.0
    %438 = vmatpush1.msra.mxu0 0.0
    %439 = vmatprep.subr.mxu0 0.0
    %440 = vmatpush1.msra.mxu0 0.0
    %441 = vmatprep.subr.mxu0 0.0
    %442 = vmatpush1.msra.mxu0 0.0
    %443 = vmatprep.mubr.f32.mxu0 0.0
    %444 = vmatmul.mubr.f32.gmra.mrb[0].mxu0 %v378
    %v445 = vpop.f32.mrb[0].mxu0
    %v446 = vadd.f32 0.0, %v445
    %v447 = vpop.f32.mrb[0].mxu0
    %v448 = vadd.f32 0.0, %v447
    %449 = vdwg.mxu0
    %450 = vmatprep.subr.mxu0 %v294
    %451 = vmatpush1.msra.mxu0 %v293
    %452 = vmatprep.subr.mxu0 %v298
    %453 = vmatpush1.msra.mxu0 %v297
    %454 = vmatprep.subr.mxu0 %v302
    %455 = vmatpush1.msra.mxu0 %v301
    %456 = vmatprep.subr.mxu0 %v306
    %457 = vmatpush1.msra.mxu0 %v305
    %458 = vmatprep.subr.mxu0 %v310
    %459 = vmatpush1.msra.mxu0 %v309
    %460 = vmatprep.subr.mxu0 %v314
    %461 = vmatpush1.msra.mxu0 %v313
    %462 = vmatprep.subr.mxu0 %v318
    %463 = vmatpush1.msra.mxu0 %v317
    %464 = vmatprep.subr.mxu0 %v322
    %465 = vmatpush1.msra.mxu0 %v321
    %466 = vmatprep.subr.mxu0 %v326
    %467 = vmatpush1.msra.mxu0 %v325
    %468 = vmatprep.subr.mxu0 %v330
    %469 = vmatpush1.msra.mxu0 %v329
    %470 = vmatprep.subr.mxu0 %v334
    %471 = vmatpush1.msra.mxu0 %v333
    %472 = vmatprep.subr.mxu0 %v338
    %473 = vmatpush1.msra.mxu0 %v337
    %474 = vmatprep.subr.mxu0 %v342
    %475 = vmatpush1.msra.mxu0 %v341
    %476 = vmatprep.subr.mxu0 %v346
    %477 = vmatpush1.msra.mxu0 %v345
    %478 = vmatprep.subr.mxu0 %v350
    %479 = vmatpush1.msra.mxu0 %v349
    %480 = vmatprep.subr.mxu0 %v354
    %481 = vmatpush1.msra.mxu0 %v353
    %482 = vmatprep.subr.mxu0 0.0
    %483 = vmatpush1.msra.mxu0 0.0
    %484 = vmatprep.subr.mxu0 0.0
    %485 = vmatpush1.msra.mxu0 0.0
    %486 = vmatprep.subr.mxu0 0.0
    %487 = vmatpush1.msra.mxu0 0.0
    %488 = vmatprep.subr.mxu0 0.0
    %489 = vmatpush1.msra.mxu0 0.0
    %490 = vmatprep.subr.mxu0 0.0
    %491 = vmatpush1.msra.mxu0 0.0
    %492 = vmatprep.subr.mxu0 0.0
    %493 = vmatpush1.msra.mxu0 0.0
    %494 = vmatprep.subr.mxu0 0.0
    %495 = vmatpush1.msra.mxu0 0.0
    %496 = vmatprep.subr.mxu0 0.0
    %497 = vmatpush1.msra.mxu0 0.0
    %498 = vmatprep.subr.mxu0 0.0
    %499 = vmatpush1.msra.mxu0 0.0
    %500 = vmatprep.subr.mxu0 0.0
    %501 = vmatpush1.msra.mxu0 0.0
    %502 = vmatprep.subr.mxu0 0.0
    %503 = vmatpush1.msra.mxu0 0.0
    %504 = vmatprep.subr.mxu0 0.0
    %505 = vmatpush1.msra.mxu0 0.0
    %506 = vmatprep.subr.mxu0 0.0
    %507 = vmatpush1.msra.mxu0 0.0
    %508 = vmatprep.subr.mxu0 0.0
    %509 = vmatpush1.msra.mxu0 0.0
    %510 = vmatprep.subr.mxu0 0.0
    %511 = vmatpush1.msra.mxu0 0.0
    %512 = vmatprep.subr.mxu0 0.0
    %513 = vmatpush1.msra.mxu0 0.0
    %514 = vmatprep.mubr.f32.mxu0 0.0
    %515 = vmatmul.mubr.f32.gmra.mrb[0].mxu0 %v378
    %v516 = vpop.f32.mrb[0].mxu0
    %v517 = vadd.f32 0.0, %v516
    %v518 = vpop.f32.mrb[0].mxu0
    %v519 = vadd.f32 0.0, %v518
    %520 = vdwg.mxu0
    %v525 = vrot.slane %v446, 6
    %v526 = vrot.slane %v448, 6
    %v527 = vrot.slane %v517, 6
    %v528 = vrot.slane %v519, 6
    %v533 = vadd.f32 %v204, %v525
    %v534 = vadd.f32 %v206, %v526
    %v535 = vadd.f32 %v281, %v527
    %v536 = vadd.f32 %v283, %v528
    %v537 = vxor.u32 %v533, 2147483648
    %v538 = vxor.u32 %v534, 2147483648
    %v539 = vxor.u32 %v536, 2147483648
    %v540 = vmul.f32 %v537, 1.442695
    %v541 = vpow.pop %v540
    %v542 = vmul.f32 %v538, 1.442695
    %v543 = vpow.pop %v542
    %v544 = vmul.f32 %v539, 1.442695
    %v545 = vpow.pop %v544
    %v546 = vadd.f32 %v541, 1.0
    %v547 = vadd.f32 %v543, 1.0
    %v548 = vadd.f32 %v545, 1.0
    %v549 = vrcp.pop %v546
    %v550 = vmul.f32 1.0, %v549
    %v551 = vrcp.pop %v547
    %v552 = vmul.f32 1.0, %v551
    %v553 = vrcp.pop %v548
    %v554 = vmul.f32 1.0, %v553
    %v555 = vtanh.pop %v535
    %v557 = vrot.slane %v376, 6
    %v559 = vmul.f32 %v552, %v557
    %v560 = vmul.f32 %v550, %v555
    %v561 = vadd.f32 %v559, %v560
    %v562 = vtanh.pop %v561
    %v563 = vmul.f32 %v554, %v562
    %v565 = vrot.slane %v563, 2
    %567 = vmatprep.subr.mxu0 %v292
    %568 = vmatpush1.msra.mxu0 %v291
    %569 = vmatprep.subr.mxu0 %v296
    %570 = vmatpush1.msra.mxu0 %v295
    %571 = vmatprep.subr.mxu0 %v300
    %572 = vmatpush1.msra.mxu0 %v299
    %573 = vmatprep.subr.mxu0 %v304
    %574 = vmatpush1.msra.mxu0 %v303
    %575 = vmatprep.subr.mxu0 %v308
    %576 = vmatpush1.msra.mxu0 %v307
    %577 = vmatprep.subr.mxu0 %v312
    %578 = vmatpush1.msra.mxu0 %v311
    %579 = vmatprep.subr.mxu0 %v316
    %580 = vmatpush1.msra.mxu0 %v315
    %581 = vmatprep.subr.mxu0 %v320
    %582 = vmatpush1.msra.mxu0 %v319
    %583 = vmatprep.subr.mxu0 %v324
    %584 = vmatpush1.msra.mxu0 %v323
    %585 = vmatprep.subr.mxu0 %v328
    %586 = vmatpush1.msra.mxu0 %v327
    %587 = vmatprep.subr.mxu0 %v332
    %588 = vmatpush1.msra.mxu0 %v331
    %589 = vmatprep.subr.mxu0 %v336
    %590 = vmatpush1.msra.mxu0 %v335
    %591 = vmatprep.subr.mxu0 %v340
    %592 = vmatpush1.msra.mxu0 %v339
    %593 = vmatprep.subr.mxu0 %v344
    %594 = vmatpush1.msra.mxu0 %v343
    %595 = vmatprep.subr.mxu0 %v348
    %596 = vmatpush1.msra.mxu0 %v347
    %597 = vmatprep.subr.mxu0 %v352
    %598 = vmatpush1.msra.mxu0 %v351
    %599 = vmatprep.subr.mxu0 0.0
    %600 = vmatpush1.msra.mxu0 0.0
    %601 = vmatprep.subr.mxu0 0.0
    %602 = vmatpush1.msra.mxu0 0.0
    %603 = vmatprep.subr.mxu0 0.0
    %604 = vmatpush1.msra.mxu0 0.0
    %605 = vmatprep.subr.mxu0 0.0
    %606 = vmatpush1.msra.mxu0 0.0
    %607 = vmatprep.subr.mxu0 0.0
    %608 = vmatpush1.msra.mxu0 0.0
    %609 = vmatprep.subr.mxu0 0.0
    %610 = vmatpush1.msra.mxu0 0.0
    %611 = vmatprep.subr.mxu0 0.0
    %612 = vmatpush1.msra.mxu0 0.0
    %613 = vmatprep.subr.mxu0 0.0
    %614 = vmatpush1.msra.mxu0 0.0
    %615 = vmatprep.subr.mxu0 0.0
    %616 = vmatpush1.msra.mxu0 0.0
    %617 = vmatprep.subr.mxu0 0.0
    %618 = vmatpush1.msra.mxu0 0.0
    %619 = vmatprep.subr.mxu0 0.0
    %620 = vmatpush1.msra.mxu0 0.0
    %621 = vmatprep.subr.mxu0 0.0
    %622 = vmatpush1.msra.mxu0 0.0
    %623 = vmatprep.subr.mxu0 0.0
    %624 = vmatpush1.msra.mxu0 0.0
    %625 = vmatprep.subr.mxu0 0.0
    %626 = vmatpush1.msra.mxu0 0.0
    %627 = vmatprep.subr.mxu0 0.0
    %628 = vmatpush1.msra.mxu0 0.0
    %629 = vmatprep.subr.mxu0 0.0
    %630 = vmatpush1.msra.mxu0 0.0
    %631 = vmatprep.mubr.f32.mxu0 0.0
    %632 = vmatmul.mubr.f32.gmra.mrb[0].mxu0 %v565
    %v633 = vpop.f32.mrb[0].mxu0
    %v634 = vadd.f32 0.0, %v633
    %v635 = vpop.f32.mrb[0].mxu0
    %v636 = vadd.f32 0.0, %v635
    %637 = vdwg.mxu0
    %638 = vmatprep.subr.mxu0 %v294
    %639 = vmatpush1.msra.mxu0 %v293
    %640 = vmatprep.subr.mxu0 %v298
    %641 = vmatpush1.msra.mxu0 %v297
    %642 = vmatprep.subr.mxu0 %v302
    %643 = vmatpush1.msra.mxu0 %v301
    %644 = vmatprep.subr.mxu0 %v306
    %645 = vmatpush1.msra.mxu0 %v305
    %646 = vmatprep.subr.mxu0 %v310
    %647 = vmatpush1.msra.mxu0 %v309
    %648 = vmatprep.subr.mxu0 %v314
    %649 = vmatpush1.msra.mxu0 %v313
    %650 = vmatprep.subr.mxu0 %v318
    %651 = vmatpush1.msra.mxu0 %v317
    %652 = vmatprep.subr.mxu0 %v322
    %653 = vmatpush1.msra.mxu0 %v321
    %654 = vmatprep.subr.mxu0 %v326
    %655 = vmatpush1.msra.mxu0 %v325
    %656 = vmatprep.subr.mxu0 %v330
    %657 = vmatpush1.msra.mxu0 %v329
    %658 = vmatprep.subr.mxu0 %v334
    %659 = vmatpush1.msra.mxu0 %v333
    %660 = vmatprep.subr.mxu0 %v338
    %661 = vmatpush1.msra.mxu0 %v337
    %662 = vmatprep.subr.mxu0 %v342
    %663 = vmatpush1.msra.mxu0 %v341
    %664 = vmatprep.subr.mxu0 %v346
    %665 = vmatpush1.msra.mxu0 %v345
    %666 = vmatprep.subr.mxu0 %v350
    %667 = vmatpush1.msra.mxu0 %v349
    %668 = vmatprep.subr.mxu0 %v354
    %669 = vmatpush1.msra.mxu0 %v353
    %670 = vmatprep.subr.mxu0 0.0
    %671 = vmatpush1.msra.mxu0 0.0
    %672 = vmatprep.subr.mxu0 0.0
    %673 = vmatpush1.msra.mxu0 0.0
    %674 = vmatprep.subr.mxu0 0.0
    %675 = vmatpush1.msra.mxu0 0.0
    %676 = vmatprep.subr.mxu0 0.0
    %677 = vmatpush1.msra.mxu0 0.0
    %678 = vmatprep.subr.mxu0 0.0
    %679 = vmatpush1.msra.mxu0 0.0
    %680 = vmatprep.subr.mxu0 0.0
    %681 = vmatpush1.msra.mxu0 0.0
    %682 = vmatprep.subr.mxu0 0.0
    %683 = vmatpush1.msra.mxu0 0.0
    %684 = vmatprep.subr.mxu0 0.0
    %685 = vmatpush1.msra.mxu0 0.0
    %686 = vmatprep.subr.mxu0 0.0
    %687 = vmatpush1.msra.mxu0 0.0
    %688 = vmatprep.subr.mxu0 0.0
    %689 = vmatpush1.msra.mxu0 0.0
    %690 = vmatprep.subr.mxu0 0.0
    %691 = vmatpush1.msra.mxu0 0.0
    %692 = vmatprep.subr.mxu0 0.0
    %693 = vmatpush1.msra.mxu0 0.0
    %694 = vmatprep.subr.mxu0 0.0
    %695 = vmatpush1.msra.mxu0 0.0
    %696 = vmatprep.subr.mxu0 0.0
    %697 = vmatpush1.msra.mxu0 0.0
    %698 = vmatprep.subr.mxu0 0.0
    %699 = vmatpush1.msra.mxu0 0.0
    %700 = vmatprep.subr.mxu0 0.0
    %701 = vmatpush1.msra.mxu0 0.0
    %702 = vmatprep.mubr.f32.mxu0 0.0
    %703 = vmatmul.mubr.f32.gmra.mrb[0].mxu0 %v565
    %v704 = vpop.f32.mrb[0].mxu0
    %v705 = vadd.f32 0.0, %v704
    %v706 = vpop.f32.mrb[0].mxu0
    %v707 = vadd.f32 0.0, %v706
    %708 = vdwg.mxu0
    %v713 = vrot.slane %v634, 4
    %v714 = vrot.slane %v636, 4
    %v715 = vrot.slane %v705, 4
    %v716 = vrot.slane %v707, 4
    %v721 = vadd.f32 %v204, %v713
    %v722 = vadd.f32 %v206, %v714
    %v723 = vadd.f32 %v281, %v715
    %v724 = vadd.f32 %v283, %v716
    %v725 = vxor.u32 %v721, 2147483648
    %v726 = vxor.u32 %v722, 2147483648
    %v727 = vxor.u32 %v724, 2147483648
    %v728 = vmul.f32 %v725, 1.442695
    %v729 = vpow.pop %v728
    %v730 = vmul.f32 %v726, 1.442695
    %v731 = vpow.pop %v730
    %v732 = vmul.f32 %v727, 1.442695
    %v733 = vpow.pop %v732
    %v734 = vadd.f32 %v729, 1.0
    %v735 = vadd.f32 %v731, 1.0
    %v736 = vadd.f32 %v733, 1.0
    %v737 = vrcp.pop %v734
    %v738 = vmul.f32 1.0, %v737
    %v739 = vrcp.pop %v735
    %v740 = vmul.f32 1.0, %v739
    %v741 = vrcp.pop %v736
    %v742 = vmul.f32 1.0, %v741
    %v743 = vtanh.pop %v723
    %v745 = vrot.slane %v561, 6
    %v747 = vmul.f32 %v740, %v745
    %v748 = vmul.f32 %v738, %v743
    %v749 = vadd.f32 %v747, %v748
    %v750 = vtanh.pop %v749
    %v751 = vmul.f32 %v742, %v750
    %v753 = vrot.slane %v751, 4
    %755 = vmatprep.subr.mxu0 %v292
    %756 = vmatpush1.msra.mxu0 %v291
    %757 = vmatprep.subr.mxu0 %v296
    %758 = vmatpush1.msra.mxu0 %v295
    %759 = vmatprep.subr.mxu0 %v300
    %760 = vmatpush1.msra.mxu0 %v299
    %761 = vmatprep.subr.mxu0 %v304
    %762 = vmatpush1.msra.mxu0 %v303
    %763 = vmatprep.subr.mxu0 %v308
    %764 = vmatpush1.msra.mxu0 %v307
    %765 = vmatprep.subr.mxu0 %v312
    %766 = vmatpush1.msra.mxu0 %v311
    %767 = vmatprep.subr.mxu0 %v316
    %768 = vmatpush1.msra.mxu0 %v315
    %769 = vmatprep.subr.mxu0 %v320
    %770 = vmatpush1.msra.mxu0 %v319
    %771 = vmatprep.subr.mxu0 %v324
    %772 = vmatpush1.msra.mxu0 %v323
    %773 = vmatprep.subr.mxu0 %v328
    %774 = vmatpush1.msra.mxu0 %v327
    %775 = vmatprep.subr.mxu0 %v332
    %776 = vmatpush1.msra.mxu0 %v331
    %777 = vmatprep.subr.mxu0 %v336
    %778 = vmatpush1.msra.mxu0 %v335
    %779 = vmatprep.subr.mxu0 %v340
    %780 = vmatpush1.msra.mxu0 %v339
    %781 = vmatprep.subr.mxu0 %v344
    %782 = vmatpush1.msra.mxu0 %v343
    %783 = vmatprep.subr.mxu0 %v348
    %784 = vmatpush1.msra.mxu0 %v347
    %785 = vmatprep.subr.mxu0 %v352
    %786 = vmatpush1.msra.mxu0 %v351
    %787 = vmatprep.subr.mxu0 0.0
    %788 = vmatpush1.msra.mxu0 0.0
    %789 = vmatprep.subr.mxu0 0.0
    %790 = vmatpush1.msra.mxu0 0.0
    %791 = vmatprep.subr.mxu0 0.0
    %792 = vmatpush1.msra.mxu0 0.0
    %793 = vmatprep.subr.mxu0 0.0
    %794 = vmatpush1.msra.mxu0 0.0
    %795 = vmatprep.subr.mxu0 0.0
    %796 = vmatpush1.msra.mxu0 0.0
    %797 = vmatprep.subr.mxu0 0.0
    %798 = vmatpush1.msra.mxu0 0.0
    %799 = vmatprep.subr.mxu0 0.0
    %800 = vmatpush1.msra.mxu0 0.0
    %801 = vmatprep.subr.mxu0 0.0
    %802 = vmatpush1.msra.mxu0 0.0
    %803 = vmatprep.subr.mxu0 0.0
    %804 = vmatpush1.msra.mxu0 0.0
    %805 = vmatprep.subr.mxu0 0.0
    %806 = vmatpush1.msra.mxu0 0.0
    %807 = vmatprep.subr.mxu0 0.0
    %808 = vmatpush1.msra.mxu0 0.0
    %809 = vmatprep.subr.mxu0 0.0
    %810 = vmatpush1.msra.mxu0 0.0
    %811 = vmatprep.subr.mxu0 0.0
    %812 = vmatpush1.msra.mxu0 0.0
    %813 = vmatprep.subr.mxu0 0.0
    %814 = vmatpush1.msra.mxu0 0.0
    %815 = vmatprep.subr.mxu0 0.0
    %816 = vmatpush1.msra.mxu0 0.0
    %817 = vmatprep.subr.mxu0 0.0
    %818 = vmatpush1.msra.mxu0 0.0
    %819 = vmatprep.mubr.f32.mxu0 0.0
    %820 = vmatmul.mubr.f32.gmra.mrb[0].mxu0 %v753
    %v821 = vpop.f32.mrb[0].mxu0
    %v822 = vadd.f32 0.0, %v821
    %v823 = vpop.f32.mrb[0].mxu0
    %v824 = vadd.f32 0.0, %v823
    %825 = vdwg.mxu0
    %826 = vmatprep.subr.mxu0 %v294
    %827 = vmatpush1.msra.mxu0 %v293
    %828 = vmatprep.subr.mxu0 %v298
    %829 = vmatpush1.msra.mxu0 %v297
    %830 = vmatprep.subr.mxu0 %v302
    %831 = vmatpush1.msra.mxu0 %v301
    %832 = vmatprep.subr.mxu0 %v306
    %833 = vmatpush1.msra.mxu0 %v305
    %834 = vmatprep.subr.mxu0 %v310
    %835 = vmatpush1.msra.mxu0 %v309
    %836 = vmatprep.subr.mxu0 %v314
    %837 = vmatpush1.msra.mxu0 %v313
    %838 = vmatprep.subr.mxu0 %v318
    %839 = vmatpush1.msra.mxu0 %v317
    %840 = vmatprep.subr.mxu0 %v322
    %841 = vmatpush1.msra.mxu0 %v321
    %842 = vmatprep.subr.mxu0 %v326
    %843 = vmatpush1.msra.mxu0 %v325
    %844 = vmatprep.subr.mxu0 %v330
    %845 = vmatpush1.msra.mxu0 %v329
    %846 = vmatprep.subr.mxu0 %v334
    %847 = vmatpush1.msra.mxu0 %v333
    %848 = vmatprep.subr.mxu0 %v338
    %849 = vmatpush1.msra.mxu0 %v337
    %850 = vmatprep.subr.mxu0 %v342
    %851 = vmatpush1.msra.mxu0 %v341
    %852 = vmatprep.subr.mxu0 %v346
    %853 = vmatpush1.msra.mxu0 %v345
    %854 = vmatprep.subr.mxu0 %v350
    %855 = vmatpush1.msra.mxu0 %v349
    %856 = vmatprep.subr.mxu0 %v354
    %857 = vmatpush1.msra.mxu0 %v353
    %858 = vmatprep.subr.mxu0 0.0
    %859 = vmatpush1.msra.mxu0 0.0
    %860 = vmatprep.subr.mxu0 0.0
    %861 = vmatpush1.msra.mxu0 0.0
    %862 = vmatprep.subr.mxu0 0.0
    %863 = vmatpush1.msra.mxu0 0.0
    %864 = vmatprep.subr.mxu0 0.0
    %865 = vmatpush1.msra.mxu0 0.0
    %866 = vmatprep.subr.mxu0 0.0
    %867 = vmatpush1.msra.mxu0 0.0
    %868 = vmatprep.subr.mxu0 0.0
    %869 = vmatpush1.msra.mxu0 0.0
    %870 = vmatprep.subr.mxu0 0.0
    %871 = vmatpush1.msra.mxu0 0.0
    %872 = vmatprep.subr.mxu0 0.0
    %873 = vmatpush1.msra.mxu0 0.0
    %874 = vmatprep.subr.mxu0 0.0
    %875 = vmatpush1.msra.mxu0 0.0
    %876 = vmatprep.subr.mxu0 0.0
    %877 = vmatpush1.msra.mxu0 0.0
    %878 = vmatprep.subr.mxu0 0.0
    %879 = vmatpush1.msra.mxu0 0.0
    %880 = vmatprep.subr.mxu0 0.0
    %881 = vmatpush1.msra.mxu0 0.0
    %882 = vmatprep.subr.mxu0 0.0
    %883 = vmatpush1.msra.mxu0 0.0
    %884 = vmatprep.subr.mxu0 0.0
    %885 = vmatpush1.msra.mxu0 0.0
    %886 = vmatprep.subr.mxu0 0.0
    %887 = vmatpush1.msra.mxu0 0.0
    %888 = vmatprep.subr.mxu0 0.0
    %889 = vmatpush1.msra.mxu0 0.0
    %890 = vmatprep.mubr.f32.mxu0 0.0
    %891 = vmatmul.mubr.f32.gmra.mrb[0].mxu0 %v753
    %v892 = vpop.f32.mrb[0].mxu0
    %v893 = vadd.f32 0.0, %v892
    %v894 = vpop.f32.mrb[0].mxu0
    %v895 = vadd.f32 0.0, %v894
    %896 = vdwg.mxu0
    %v901 = vrot.slane %v822, 2
    %v902 = vrot.slane %v824, 2
    %v903 = vrot.slane %v893, 2
    %v904 = vrot.slane %v895, 2
    %v909 = vadd.f32 %v204, %v901
    %v910 = vadd.f32 %v206, %v902
    %v911 = vadd.f32 %v281, %v903
    %v912 = vadd.f32 %v283, %v904
    %v913 = vxor.u32 %v909, 2147483648
    %v914 = vxor.u32 %v910, 2147483648
    %v915 = vxor.u32 %v912, 2147483648
    %v916 = vmul.f32 %v913, 1.442695
    %v917 = vpow.pop %v916
    %v918 = vmul.f32 %v914, 1.442695
    %v919 = vpow.pop %v918
    %v920 = vmul.f32 %v915, 1.442695
    %v921 = vpow.pop %v920
    %v922 = vadd.f32 %v917, 1.0
    %v923 = vadd.f32 %v919, 1.0
    %v924 = vadd.f32 %v921, 1.0
    %v925 = vrcp.pop %v922
    %v926 = vmul.f32 1.0, %v925
    %v927 = vrcp.pop %v923
    %v928 = vmul.f32 1.0, %v927
    %v929 = vrcp.pop %v924
    %v930 = vmul.f32 1.0, %v929
    %v931 = vtanh.pop %v911
    %v933 = vrot.slane %v749, 6
    %v935 = vmul.f32 %v928, %v933
    %v936 = vmul.f32 %v926, %v931
    %v937 = vadd.f32 %v935, %v936
    %v938 = vtanh.pop %v937
    %v939 = vmul.f32 %v930, %v938
    %v941 = vrot.slane %v939, 6
    %943 = vmatprep.subr.mxu0 %v292
    %944 = vmatpush1.msra.mxu0 %v291
    %945 = vmatprep.subr.mxu0 %v296
    %946 = vmatpush1.msra.mxu0 %v295
    %947 = vmatprep.subr.mxu0 %v300
    %948 = vmatpush1.msra.mxu0 %v299
    %949 = vmatprep.subr.mxu0 %v304
    %950 = vmatpush1.msra.mxu0 %v303
    %951 = vmatprep.subr.mxu0 %v308
    %952 = vmatpush1.msra.mxu0 %v307
    %953 = vmatprep.subr.mxu0 %v312
    %954 = vmatpush1.msra.mxu0 %v311
    %955 = vmatprep.subr.mxu0 %v316
    %956 = vmatpush1.msra.mxu0 %v315
    %957 = vmatprep.subr.mxu0 %v320
    %958 = vmatpush1.msra.mxu0 %v319
    %959 = vmatprep.subr.mxu0 %v324
    %960 = vmatpush1.msra.mxu0 %v323
    %961 = vmatprep.subr.mxu0 %v328
    %962 = vmatpush1.msra.mxu0 %v327
    %963 = vmatprep.subr.mxu0 %v332
    %964 = vmatpush1.msra.mxu0 %v331
    %965 = vmatprep.subr.mxu0 %v336
    %966 = vmatpush1.msra.mxu0 %v335
    %967 = vmatprep.subr.mxu0 %v340
    %968 = vmatpush1.msra.mxu0 %v339
    %969 = vmatprep.subr.mxu0 %v344
    %970 = vmatpush1.msra.mxu0 %v343
    %971 = vmatprep.subr.mxu0 %v348
    %972 = vmatpush1.msra.mxu0 %v347
    %973 = vmatprep.subr.mxu0 %v352
    %974 = vmatpush1.msra.mxu0 %v351
    %975 = vmatprep.subr.mxu0 0.0
    %976 = vmatpush1.msra.mxu0 0.0
    %977 = vmatprep.subr.mxu0 0.0
    %978 = vmatpush1.msra.mxu0 0.0
    %979 = vmatprep.subr.mxu0 0.0
    %980 = vmatpush1.msra.mxu0 0.0
    %981 = vmatprep.subr.mxu0 0.0
    %982 = vmatpush1.msra.mxu0 0.0
    %983 = vmatprep.subr.mxu0 0.0
    %984 = vmatpush1.msra.mxu0 0.0
    %985 = vmatprep.subr.mxu0 0.0
    %986 = vmatpush1.msra.mxu0 0.0
    %987 = vmatprep.subr.mxu0 0.0
    %988 = vmatpush1.msra.mxu0 0.0
    %989 = vmatprep.subr.mxu0 0.0
    %990 = vmatpush1.msra.mxu0 0.0
    %991 = vmatprep.subr.mxu0 0.0
    %992 = vmatpush1.msra.mxu0 0.0
    %993 = vmatprep.subr.mxu0 0.0
    %994 = vmatpush1.msra.mxu0 0.0
    %995 = vmatprep.subr.mxu0 0.0
    %996 = vmatpush1.msra.mxu0 0.0
    %997 = vmatprep.subr.mxu0 0.0
    %998 = vmatpush1.msra.mxu0 0.0
    %999 = vmatprep.subr.mxu0 0.0
    %1000 = vmatpush1.msra.mxu0 0.0
    %1001 = vmatprep.subr.mxu0 0.0
    %1002 = vmatpush1.msra.mxu0 0.0
    %1003 = vmatprep.subr.mxu0 0.0
    %1004 = vmatpush1.msra.mxu0 0.0
    %1005 = vmatprep.subr.mxu0 0.0
    %1006 = vmatpush1.msra.mxu0 0.0
    %1007 = vmatprep.mubr.f32.mxu0 0.0
    %1008 = vmatmul.mubr.f32.gmra.mrb[0].mxu0 %v941
    %v1009 = vpop.f32.mrb[0].mxu0
    %v1010 = vadd.f32 0.0, %v1009
    %v1011 = vpop.f32.mrb[0].mxu0
    %v1012 = vadd.f32 0.0, %v1011
    %1013 = vdwg.mxu0
    %1014 = vmatprep.subr.mxu0 %v294
    %1015 = vmatpush1.msra.mxu0 %v293
    %1016 = vmatprep.subr.mxu0 %v298
    %1017 = vmatpush1.msra.mxu0 %v297
    %1018 = vmatprep.subr.mxu0 %v302
    %1019 = vmatpush1.msra.mxu0 %v301
    %1020 = vmatprep.subr.mxu0 %v306
    %1021 = vmatpush1.msra.mxu0 %v305
    %1022 = vmatprep.subr.mxu0 %v310
    %1023 = vmatpush1.msra.mxu0 %v309
    %1024 = vmatprep.subr.mxu0 %v314
    %1025 = vmatpush1.msra.mxu0 %v313
    %1026 = vmatprep.subr.mxu0 %v318
    %1027 = vmatpush1.msra.mxu0 %v317
    %1028 = vmatprep.subr.mxu0 %v322
    %1029 = vmatpush1.msra.mxu0 %v321
    %1030 = vmatprep.subr.mxu0 %v326
    %1031 = vmatpush1.msra.mxu0 %v325
    %1032 = vmatprep.subr.mxu0 %v330
    %1033 = vmatpush1.msra.mxu0 %v329
    %1034 = vmatprep.subr.mxu0 %v334
    %1035 = vmatpush1.msra.mxu0 %v333
    %1036 = vmatprep.subr.mxu0 %v338
    %1037 = vmatpush1.msra.mxu0 %v337
    %1038 = vmatprep.subr.mxu0 %v342
    %1039 = vmatpush1.msra.mxu0 %v341
    %1040 = vmatprep.subr.mxu0 %v346
    %1041 = vmatpush1.msra.mxu0 %v345
    %1042 = vmatprep.subr.mxu0 %v350
    %1043 = vmatpush1.msra.mxu0 %v349
    %1044 = vmatprep.subr.mxu0 %v354
    %1045 = vmatpush1.msra.mxu0 %v353
    %1046 = vmatprep.subr.mxu0 0.0
    %1047 = vmatpush1.msra.mxu0 0.0
    %1048 = vmatprep.subr.mxu0 0.0
    %1049 = vmatpush1.msra.mxu0 0.0
    %1050 = vmatprep.subr.mxu0 0.0
    %1051 = vmatpush1.msra.mxu0 0.0
    %1052 = vmatprep.subr.mxu0 0.0
    %1053 = vmatpush1.msra.mxu0 0.0
    %1054 = vmatprep.subr.mxu0 0.0
    %1055 = vmatpush1.msra.mxu0 0.0
    %1056 = vmatprep.subr.mxu0 0.0
    %1057 = vmatpush1.msra.mxu0 0.0
    %1058 = vmatprep.subr.mxu0 0.0
    %1059 = vmatpush1.msra.mxu0 0.0
    %1060 = vmatprep.subr.mxu0 0.0
    %1061 = vmatpush1.msra.mxu0 0.0
    %1062 = vmatprep.subr.mxu0 0.0
    %1063 = vmatpush1.msra.mxu0 0.0
    %1064 = vmatprep.subr.mxu0 0.0
    %1065 = vmatpush1.msra.mxu0 0.0
    %1066 = vmatprep.subr.mxu0 0.0
    %1067 = vmatpush1.msra.mxu0 0.0
    %1068 = vmatprep.subr.mxu0 0.0
    %1069 = vmatpush1.msra.mxu0 0.0
    %1070 = vmatprep.subr.mxu0 0.0
    %1071 = vmatpush1.msra.mxu0 0.0
    %1072 = vmatprep.subr.mxu0 0.0
    %1073 = vmatpush1.msra.mxu0 0.0
    %1074 = vmatprep.subr.mxu0 0.0
    %1075 = vmatpush1.msra.mxu0 0.0
    %1076 = vmatprep.subr.mxu0 0.0
    %1077 = vmatpush1.msra.mxu0 0.0
    %1078 = vmatprep.mubr.f32.mxu0 0.0
    %1079 = vmatmul.mubr.f32.gmra.mrb[0].mxu0 %v941
    %v1080 = vpop.f32.mrb[0].mxu0
    %v1081 = vadd.f32 0.0, %v1080
    %v1082 = vpop.f32.mrb[0].mxu0
    %v1083 = vadd.f32 0.0, %v1082
    %1084 = vdwg.mxu0
    %v1085 = vadd.f32 %v210, %v1010
    %v1086 = vadd.f32 %v212, %v1012
    %v1087 = vadd.f32 %v287, %v1081
    %v1088 = vadd.f32 %v289, %v1083
    %v1089 = vxor.u32 %v1085, 2147483648
    %v1090 = vxor.u32 %v1086, 2147483648
    %v1091 = vxor.u32 %v1088, 2147483648
    %v1092 = vmul.f32 %v1089, 1.442695
    %v1093 = vpow.pop %v1092
    %v1094 = vmul.f32 %v1090, 1.442695
    %v1095 = vpow.pop %v1094
    %v1096 = vmul.f32 %v1091, 1.442695
    %v1097 = vpow.pop %v1096
    %v1098 = vadd.f32 %v1093, 1.0
    %v1099 = vadd.f32 %v1095, 1.0
    %v1100 = vadd.f32 %v1097, 1.0
    %v1101 = vrcp.pop %v1098
    %v1102 = vmul.f32 1.0, %v1101
    %v1103 = vrcp.pop %v1099
    %v1104 = vmul.f32 1.0, %v1103
    %v1105 = vrcp.pop %v1100
    %v1106 = vmul.f32 1.0, %v1105
    %v1107 = vtanh.pop %v1087
    %v1109 = vrot.slane %v937, 6
    %v1111 = vmul.f32 %v1104, %v1109
    %v1112 = vmul.f32 %v1102, %v1107
    %v1113 = vadd.f32 %v1111, %v1112
    %v1114 = vtanh.pop %v1113
    %v1115 = vmul.f32 %v1106, %v1114
    %1116 = vmatprep.subr.mxu0 %v292
    %1117 = vmatpush1.msra.mxu0 %v291
    %1118 = vmatprep.subr.mxu0 %v296
    %1119 = vmatpush1.msra.mxu0 %v295
    %1120 = vmatprep.subr.mxu0 %v300
    %1121 = vmatpush1.msra.mxu0 %v299
    %1122 = vmatprep.subr.mxu0 %v304
    %1123 = vmatpush1.msra.mxu0 %v303
    %1124 = vmatprep.subr.mxu0 %v308
    %1125 = vmatpush1.msra.mxu0 %v307
    %1126 = vmatprep.subr.mxu0 %v312
    %1127 = vmatpush1.msra.mxu0 %v311
    %1128 = vmatprep.subr.mxu0 %v316
    %1129 = vmatpush1.msra.mxu0 %v315
    %1130 = vmatprep.subr.mxu0 %v320
    %1131 = vmatpush1.msra.mxu0 %v319
    %1132 = vmatprep.subr.mxu0 %v324
    %1133 = vmatpush1.msra.mxu0 %v323
    %1134 = vmatprep.subr.mxu0 %v328
    %1135 = vmatpush1.msra.mxu0 %v327
    %1136 = vmatprep.subr.mxu0 %v332
    %1137 = vmatpush1.msra.mxu0 %v331
    %1138 = vmatprep.subr.mxu0 %v336
    %1139 = vmatpush1.msra.mxu0 %v335
    %1140 = vmatprep.subr.mxu0 %v340
    %1141 = vmatpush1.msra.mxu0 %v339
    %1142 = vmatprep.subr.mxu0 %v344
    %1143 = vmatpush1.msra.mxu0 %v343
    %1144 = vmatprep.subr.mxu0 %v348
    %1145 = vmatpush1.msra.mxu0 %v347
    %1146 = vmatprep.subr.mxu0 %v352
    %1147 = vmatpush1.msra.mxu0 %v351
    %1148 = vmatprep.subr.mxu0 0.0
    %1149 = vmatpush1.msra.mxu0 0.0
    %1150 = vmatprep.subr.mxu0 0.0
    %1151 = vmatpush1.msra.mxu0 0.0
    %1152 = vmatprep.subr.mxu0 0.0
    %1153 = vmatpush1.msra.mxu0 0.0
    %1154 = vmatprep.subr.mxu0 0.0
    %1155 = vmatpush1.msra.mxu0 0.0
    %1156 = vmatprep.subr.mxu0 0.0
    %1157 = vmatpush1.msra.mxu0 0.0
    %1158 = vmatprep.subr.mxu0 0.0
    %1159 = vmatpush1.msra.mxu0 0.0
    %1160 = vmatprep.subr.mxu0 0.0
    %1161 = vmatpush1.msra.mxu0 0.0
    %1162 = vmatprep.subr.mxu0 0.0
    %1163 = vmatpush1.msra.mxu0 0.0
    %1164 = vmatprep.subr.mxu0 0.0
    %1165 = vmatpush1.msra.mxu0 0.0
    %1166 = vmatprep.subr.mxu0 0.0
    %1167 = vmatpush1.msra.mxu0 0.0
    %1168 = vmatprep.subr.mxu0 0.0
    %1169 = vmatpush1.msra.mxu0 0.0
    %1170 = vmatprep.subr.mxu0 0.0
    %1171 = vmatpush1.msra.mxu0 0.0
    %1172 = vmatprep.subr.mxu0 0.0
    %1173 = vmatpush1.msra.mxu0 0.0
    %1174 = vmatprep.subr.mxu0 0.0
    %1175 = vmatpush1.msra.mxu0 0.0
    %1176 = vmatprep.subr.mxu0 0.0
    %1177 = vmatpush1.msra.mxu0 0.0
    %1178 = vmatprep.subr.mxu0 0.0
    %1179 = vmatpush1.msra.mxu0 0.0
    %1180 = vmatprep.mubr.f32.mxu0 0.0
    %1181 = vmatmul.mubr.f32.gmra.mrb[0].mxu0 %v1115
    %v1182 = vpop.f32.mrb[0].mxu0
    %v1183 = vadd.f32 0.0, %v1182
    %v1184 = vpop.f32.mrb[0].mxu0
    %v1185 = vadd.f32 0.0, %v1184
    %1186 = vdwg.mxu0
    %1187 = vmatprep.subr.mxu0 %v294
    %1188 = vmatpush1.msra.mxu0 %v293
    %1189 = vmatprep.subr.mxu0 %v298
    %1190 = vmatpush1.msra.mxu0 %v297
    %1191 = vmatprep.subr.mxu0 %v302
    %1192 = vmatpush1.msra.mxu0 %v301
    %1193 = vmatprep.subr.mxu0 %v306
    %1194 = vmatpush1.msra.mxu0 %v305
    %1195 = vmatprep.subr.mxu0 %v310
    %1196 = vmatpush1.msra.mxu0 %v309
    %1197 = vmatprep.subr.mxu0 %v314
    %1198 = vmatpush1.msra.mxu0 %v313
    %1199 = vmatprep.subr.mxu0 %v318
    %1200 = vmatpush1.msra.mxu0 %v317
    %1201 = vmatprep.subr.mxu0 %v322
    %1202 = vmatpush1.msra.mxu0 %v321
    %1203 = vmatprep.subr.mxu0 %v326
    %1204 = vmatpush1.msra.mxu0 %v325
    %1205 = vmatprep.subr.mxu0 %v330
    %1206 = vmatpush1.msra.mxu0 %v329
    %1207 = vmatprep.subr.mxu0 %v334
    %1208 = vmatpush1.msra.mxu0 %v333
    %1209 = vmatprep.subr.mxu0 %v338
    %1210 = vmatpush1.msra.mxu0 %v337
    %1211 = vmatprep.subr.mxu0 %v342
    %1212 = vmatpush1.msra.mxu0 %v341
    %1213 = vmatprep.subr.mxu0 %v346
    %1214 = vmatpush1.msra.mxu0 %v345
    %1215 = vmatprep.subr.mxu0 %v350
    %1216 = vmatpush1.msra.mxu0 %v349
    %1217 = vmatprep.subr.mxu0 %v354
    %1218 = vmatpush1.msra.mxu0 %v353
    %1219 = vmatprep.subr.mxu0 0.0
    %1220 = vmatpush1.msra.mxu0 0.0
    %1221 = vmatprep.subr.mxu0 0.0
    %1222 = vmatpush1.msra.mxu0 0.0
    %1223 = vmatprep.subr.mxu0 0.0
    %1224 = vmatpush1.msra.mxu0 0.0
    %1225 = vmatprep.subr.mxu0 0.0
    %1226 = vmatpush1.msra.mxu0 0.0
    %1227 = vmatprep.subr.mxu0 0.0
    %1228 = vmatpush1.msra.mxu0 0.0
    %1229 = vmatprep.subr.mxu0 0.0
    %1230 = vmatpush1.msra.mxu0 0.0
    %1231 = vmatprep.subr.mxu0 0.0
    %1232 = vmatpush1.msra.mxu0 0.0
    %1233 = vmatprep.subr.mxu0 0.0
    %1234 = vmatpush1.msra.mxu0 0.0
    %1235 = vmatprep.subr.mxu0 0.0
    %1236 = vmatpush1.msra.mxu0 0.0
    %1237 = vmatprep.subr.mxu0 0.0
    %1238 = vmatpush1.msra.mxu0 0.0
    %1239 = vmatprep.subr.mxu0 0.0
    %1240 = vmatpush1.msra.mxu0 0.0
    %1241 = vmatprep.subr.mxu0 0.0
    %1242 = vmatpush1.msra.mxu0 0.0
    %1243 = vmatprep.subr.mxu0 0.0
    %1244 = vmatpush1.msra.mxu0 0.0
    %1245 = vmatprep.subr.mxu0 0.0
    %1246 = vmatpush1.msra.mxu0 0.0
    %1247 = vmatprep.subr.mxu0 0.0
    %1248 = vmatpush1.msra.mxu0 0.0
    %1249 = vmatprep.subr.mxu0 0.0
    %1250 = vmatpush1.msra.mxu0 0.0
    %1251 = vmatprep.mubr.f32.mxu0 0.0
    %1252 = vmatmul.mubr.f32.gmra.mrb[0].mxu0 %v1115
    %v1253 = vpop.f32.mrb[0].mxu0
    %v1254 = vadd.f32 0.0, %v1253
    %v1255 = vpop.f32.mrb[0].mxu0
    %v1256 = vadd.f32 0.0, %v1255
    %1257 = vdwg.mxu0
    %v1262 = vrot.slane %v1183, 6
    %v1263 = vrot.slane %v1185, 6
    %v1264 = vrot.slane %v1254, 6
    %v1265 = vrot.slane %v1256, 6
    %v1270 = vadd.f32 %v210, %v1262
    %v1271 = vadd.f32 %v212, %v1263
    %v1272 = vadd.f32 %v287, %v1264
    %v1273 = vadd.f32 %v289, %v1265
    %v1274 = vxor.u32 %v1270, 2147483648
    %v1275 = vxor.u32 %v1271, 2147483648
    %v1276 = vxor.u32 %v1273, 2147483648
    %v1277 = vmul.f32 %v1274, 1.442695
    %v1278 = vpow.pop %v1277
    %v1279 = vmul.f32 %v1275, 1.442695
    %v1280 = vpow.pop %v1279
    %v1281 = vmul.f32 %v1276, 1.442695
    %v1282 = vpow.pop %v1281
    %v1283 = vadd.f32 %v1278, 1.0
    %v1284 = vadd.f32 %v1280, 1.0
    %v1285 = vadd.f32 %v1282, 1.0
    %v1286 = vrcp.pop %v1283
    %v1287 = vmul.f32 1.0, %v1286
    %v1288 = vrcp.pop %v1284
    %v1289 = vmul.f32 1.0, %v1288
    %v1290 = vrcp.pop %v1285
    %v1291 = vmul.f32 1.0, %v1290
    %v1292 = vtanh.pop %v1272
    %v1294 = vrot.slane %v1113, 6
    %v1296 = vmul.f32 %v1289, %v1294
    %v1297 = vmul.f32 %v1287, %v1292
    %v1298 = vadd.f32 %v1296, %v1297
    %v1299 = vtanh.pop %v1298
    %v1300 = vmul.f32 %v1291, %v1299
    %v1302 = vrot.slane %v1300, 2
    %1304 = vmatprep.subr.mxu0 %v292
    %1305 = vmatpush1.msra.mxu0 %v291
    %1306 = vmatprep.subr.mxu0 %v296
    %1307 = vmatpush1.msra.mxu0 %v295
    %1308 = vmatprep.subr.mxu0 %v300
    %1309 = vmatpush1.msra.mxu0 %v299
    %1310 = vmatprep.subr.mxu0 %v304
    %1311 = vmatpush1.msra.mxu0 %v303
    %1312 = vmatprep.subr.mxu0 %v308
    %1313 = vmatpush1.msra.mxu0 %v307
    %1314 = vmatprep.subr.mxu0 %v312
    %1315 = vmatpush1.msra.mxu0 %v311
    %1316 = vmatprep.subr.mxu0 %v316
    %1317 = vmatpush1.msra.mxu0 %v315
    %1318 = vmatprep.subr.mxu0 %v320
    %1319 = vmatpush1.msra.mxu0 %v319
    %1320 = vmatprep.subr.mxu0 %v324
    %1321 = vmatpush1.msra.mxu0 %v323
    %1322 = vmatprep.subr.mxu0 %v328
    %1323 = vmatpush1.msra.mxu0 %v327
    %1324 = vmatprep.subr.mxu0 %v332
    %1325 = vmatpush1.msra.mxu0 %v331
    %1326 = vmatprep.subr.mxu0 %v336
    %1327 = vmatpush1.msra.mxu0 %v335
    %1328 = vmatprep.subr.mxu0 %v340
    %1329 = vmatpush1.msra.mxu0 %v339
    %1330 = vmatprep.subr.mxu0 %v344
    %1331 = vmatpush1.msra.mxu0 %v343
    %1332 = vmatprep.subr.mxu0 %v348
    %1333 = vmatpush1.msra.mxu0 %v347
    %1334 = vmatprep.subr.mxu0 %v352
    %1335 = vmatpush1.msra.mxu0 %v351
    %1336 = vmatprep.subr.mxu0 0.0
    %1337 = vmatpush1.msra.mxu0 0.0
    %1338 = vmatprep.subr.mxu0 0.0
    %1339 = vmatpush1.msra.mxu0 0.0
    %1340 = vmatprep.subr.mxu0 0.0
    %1341 = vmatpush1.msra.mxu0 0.0
    %1342 = vmatprep.subr.mxu0 0.0
    %1343 = vmatpush1.msra.mxu0 0.0
    %1344 = vmatprep.subr.mxu0 0.0
    %1345 = vmatpush1.msra.mxu0 0.0
    %1346 = vmatprep.subr.mxu0 0.0
    %1347 = vmatpush1.msra.mxu0 0.0
    %1348 = vmatprep.subr.mxu0 0.0
    %1349 = vmatpush1.msra.mxu0 0.0
    %1350 = vmatprep.subr.mxu0 0.0
    %1351 = vmatpush1.msra.mxu0 0.0
    %1352 = vmatprep.subr.mxu0 0.0
    %1353 = vmatpush1.msra.mxu0 0.0
    %1354 = vmatprep.subr.mxu0 0.0
    %1355 = vmatpush1.msra.mxu0 0.0
    %1356 = vmatprep.subr.mxu0 0.0
    %1357 = vmatpush1.msra.mxu0 0.0
    %1358 = vmatprep.subr.mxu0 0.0
    %1359 = vmatpush1.msra.mxu0 0.0
    %1360 = vmatprep.subr.mxu0 0.0
    %1361 = vmatpush1.msra.mxu0 0.0
    %1362 = vmatprep.subr.mxu0 0.0
    %1363 = vmatpush1.msra.mxu0 0.0
    %1364 = vmatprep.subr.mxu0 0.0
    %1365 = vmatpush1.msra.mxu0 0.0
    %1366 = vmatprep.subr.mxu0 0.0
    %1367 = vmatpush1.msra.mxu0 0.0
    %1368 = vmatprep.mubr.f32.mxu0 0.0
    %1369 = vmatmul.mubr.f32.gmra.mrb[0].mxu0 %v1302
    %v1370 = vpop.f32.mrb[0].mxu0
    %v1371 = vadd.f32 0.0, %v1370
    %v1372 = vpop.f32.mrb[0].mxu0
    %v1373 = vadd.f32 0.0, %v1372
    %1374 = vdwg.mxu0
    %1375 = vmatprep.subr.mxu0 %v294
    %1376 = vmatpush1.msra.mxu0 %v293
    %1377 = vmatprep.subr.mxu0 %v298
    %1378 = vmatpush1.msra.mxu0 %v297
    %1379 = vmatprep.subr.mxu0 %v302
    %1380 = vmatpush1.msra.mxu0 %v301
    %1381 = vmatprep.subr.mxu0 %v306
    %1382 = vmatpush1.msra.mxu0 %v305
    %1383 = vmatprep.subr.mxu0 %v310
    %1384 = vmatpush1.msra.mxu0 %v309
    %1385 = vmatprep.subr.mxu0 %v314
    %1386 = vmatpush1.msra.mxu0 %v313
    %1387 = vmatprep.subr.mxu0 %v318
    %1388 = vmatpush1.msra.mxu0 %v317
    %1389 = vmatprep.subr.mxu0 %v322
    %1390 = vmatpush1.msra.mxu0 %v321
    %1391 = vmatprep.subr.mxu0 %v326
    %1392 = vmatpush1.msra.mxu0 %v325
    %1393 = vmatprep.subr.mxu0 %v330
    %1394 = vmatpush1.msra.mxu0 %v329
    %1395 = vmatprep.subr.mxu0 %v334
    %1396 = vmatpush1.msra.mxu0 %v333
    %1397 = vmatprep.subr.mxu0 %v338
    %1398 = vmatpush1.msra.mxu0 %v337
    %1399 = vmatprep.subr.mxu0 %v342
    %1400 = vmatpush1.msra.mxu0 %v341
    %1401 = vmatprep.subr.mxu0 %v346
    %1402 = vmatpush1.msra.mxu0 %v345
    %1403 = vmatprep.subr.mxu0 %v350
    %1404 = vmatpush1.msra.mxu0 %v349
    %1405 = vmatprep.subr.mxu0 %v354
    %1406 = vmatpush1.msra.mxu0 %v353
    %1407 = vmatprep.subr.mxu0 0.0
    %1408 = vmatpush1.msra.mxu0 0.0
    %1409 = vmatprep.subr.mxu0 0.0
    %1410 = vmatpush1.msra.mxu0 0.0
    %1411 = vmatprep.subr.mxu0 0.0
    %1412 = vmatpush1.msra.mxu0 0.0
    %1413 = vmatprep.subr.mxu0 0.0
    %1414 = vmatpush1.msra.mxu0 0.0
    %1415 = vmatprep.subr.mxu0 0.0
    %1416 = vmatpush1.msra.mxu0 0.0
    %1417 = vmatprep.subr.mxu0 0.0
    %1418 = vmatpush1.msra.mxu0 0.0
    %1419 = vmatprep.subr.mxu0 0.0
    %1420 = vmatpush1.msra.mxu0 0.0
    %1421 = vmatprep.subr.mxu0 0.0
    %1422 = vmatpush1.msra.mxu0 0.0
    %1423 = vmatprep.subr.mxu0 0.0
    %1424 = vmatpush1.msra.mxu0 0.0
    %1425 = vmatprep.subr.mxu0 0.0
    %1426 = vmatpush1.msra.mxu0 0.0
    %1427 = vmatprep.subr.mxu0 0.0
    %1428 = vmatpush1.msra.mxu0 0.0
    %1429 = vmatprep.subr.mxu0 0.0
    %1430 = vmatpush1.msra.mxu0 0.0
    %1431 = vmatprep.subr.mxu0 0.0
    %1432 = vmatpush1.msra.mxu0 0.0
    %1433 = vmatprep.subr.mxu0 0.0
    %1434 = vmatpush1.msra.mxu0 0.0
    %1435 = vmatprep.subr.mxu0 0.0
    %1436 = vmatpush1.msra.mxu0 0.0
    %1437 = vmatprep.subr.mxu0 0.0
    %1438 = vmatpush1.msra.mxu0 0.0
    %1439 = vmatprep.mubr.f32.mxu0 0.0
    %1440 = vmatmul.mubr.f32.gmra.mrb[0].mxu0 %v1302
    %v1441 = vpop.f32.mrb[0].mxu0
    %v1442 = vadd.f32 0.0, %v1441
    %v1443 = vpop.f32.mrb[0].mxu0
    %v1444 = vadd.f32 0.0, %v1443
    %1445 = vdwg.mxu0
    %v1450 = vrot.slane %v1371, 4
    %v1451 = vrot.slane %v1373, 4
    %v1452 = vrot.slane %v1442, 4
    %v1453 = vrot.slane %v1444, 4
    %v1458 = vadd.f32 %v210, %v1450
    %v1459 = vadd.f32 %v212, %v1451
    %v1460 = vadd.f32 %v287, %v1452
    %v1461 = vadd.f32 %v289, %v1453
    %v1462 = vxor.u32 %v1458, 2147483648
    %v1463 = vxor.u32 %v1459, 2147483648
    %v1464 = vxor.u32 %v1461, 2147483648
    %v1465 = vmul.f32 %v1462, 1.442695
    %v1466 = vpow.pop %v1465
    %v1467 = vmul.f32 %v1463, 1.442695
    %v1468 = vpow.pop %v1467
    %v1469 = vmul.f32 %v1464, 1.442695
    %v1470 = vpow.pop %v1469
    %v1471 = vadd.f32 %v1466, 1.0
    %v1472 = vadd.f32 %v1468, 1.0
    %v1473 = vadd.f32 %v1470, 1.0
    %v1474 = vrcp.pop %v1471
    %v1475 = vmul.f32 1.0, %v1474
    %v1476 = vrcp.pop %v1472
    %v1477 = vmul.f32 1.0, %v1476
    %v1478 = vrcp.pop %v1473
    %v1479 = vmul.f32 1.0, %v1478
    %v1480 = vtanh.pop %v1460
    %v1482 = vrot.slane %v1298, 6
    %v1484 = vmul.f32 %v1477, %v1482
    %v1485 = vmul.f32 %v1475, %v1480
    %v1486 = vadd.f32 %v1484, %v1485
    %v1487 = vtanh.pop %v1486
    %v1488 = vmul.f32 %v1479, %v1487
    %v1490 = vrot.slane %v1488, 4
    %1492 = vmatprep.subr.mxu0 %v292
    %1493 = vmatpush1.msra.mxu0 %v291
    %1494 = vmatprep.subr.mxu0 %v296
    %1495 = vmatpush1.msra.mxu0 %v295
    %1496 = vmatprep.subr.mxu0 %v300
    %1497 = vmatpush1.msra.mxu0 %v299
    %1498 = vmatprep.subr.mxu0 %v304
    %1499 = vmatpush1.msra.mxu0 %v303
    %1500 = vmatprep.subr.mxu0 %v308
    %1501 = vmatpush1.msra.mxu0 %v307
    %1502 = vmatprep.subr.mxu0 %v312
    %1503 = vmatpush1.msra.mxu0 %v311
    %1504 = vmatprep.subr.mxu0 %v316
    %1505 = vmatpush1.msra.mxu0 %v315
    %1506 = vmatprep.subr.mxu0 %v320
    %1507 = vmatpush1.msra.mxu0 %v319
    %1508 = vmatprep.subr.mxu0 %v324
    %1509 = vmatpush1.msra.mxu0 %v323
    %1510 = vmatprep.subr.mxu0 %v328
    %1511 = vmatpush1.msra.mxu0 %v327
    %1512 = vmatprep.subr.mxu0 %v332
    %1513 = vmatpush1.msra.mxu0 %v331
    %1514 = vmatprep.subr.mxu0 %v336
    %1515 = vmatpush1.msra.mxu0 %v335
    %1516 = vmatprep.subr.mxu0 %v340
    %1517 = vmatpush1.msra.mxu0 %v339
    %1518 = vmatprep.subr.mxu0 %v344
    %1519 = vmatpush1.msra.mxu0 %v343
    %1520 = vmatprep.subr.mxu0 %v348
    %1521 = vmatpush1.msra.mxu0 %v347
    %1522 = vmatprep.subr.mxu0 %v352
    %1523 = vmatpush1.msra.mxu0 %v351
    %1524 = vmatprep.subr.mxu0 0.0
    %1525 = vmatpush1.msra.mxu0 0.0
    %1526 = vmatprep.subr.mxu0 0.0
    %1527 = vmatpush1.msra.mxu0 0.0
    %1528 = vmatprep.subr.mxu0 0.0
    %1529 = vmatpush1.msra.mxu0 0.0
    %1530 = vmatprep.subr.mxu0 0.0
    %1531 = vmatpush1.msra.mxu0 0.0
    %1532 = vmatprep.subr.mxu0 0.0
    %1533 = vmatpush1.msra.mxu0 0.0
    %1534 = vmatprep.subr.mxu0 0.0
    %1535 = vmatpush1.msra.mxu0 0.0
    %1536 = vmatprep.subr.mxu0 0.0
    %1537 = vmatpush1.msra.mxu0 0.0
    %1538 = vmatprep.subr.mxu0 0.0
    %1539 = vmatpush1.msra.mxu0 0.0
    %1540 = vmatprep.subr.mxu0 0.0
    %1541 = vmatpush1.msra.mxu0 0.0
    %1542 = vmatprep.subr.mxu0 0.0
    %1543 = vmatpush1.msra.mxu0 0.0
    %1544 = vmatprep.subr.mxu0 0.0
    %1545 = vmatpush1.msra.mxu0 0.0
    %1546 = vmatprep.subr.mxu0 0.0
    %1547 = vmatpush1.msra.mxu0 0.0
    %1548 = vmatprep.subr.mxu0 0.0
    %1549 = vmatpush1.msra.mxu0 0.0
    %1550 = vmatprep.subr.mxu0 0.0
    %1551 = vmatpush1.msra.mxu0 0.0
    %1552 = vmatprep.subr.mxu0 0.0
    %1553 = vmatpush1.msra.mxu0 0.0
    %1554 = vmatprep.subr.mxu0 0.0
    %1555 = vmatpush1.msra.mxu0 0.0
    %1556 = vmatprep.mubr.f32.mxu0 0.0
    %1557 = vmatmul.mubr.f32.gmra.mrb[0].mxu0 %v1490
    %v1558 = vpop.f32.mrb[0].mxu0
    %v1559 = vadd.f32 0.0, %v1558
    %v1560 = vpop.f32.mrb[0].mxu0
    %v1561 = vadd.f32 0.0, %v1560
    %1562 = vdwg.mxu0
    %1563 = vmatprep.subr.mxu0 %v294
    %1564 = vmatpush1.msra.mxu0 %v293
    %1565 = vmatprep.subr.mxu0 %v298
    %1566 = vmatpush1.msra.mxu0 %v297
    %1567 = vmatprep.subr.mxu0 %v302
    %1568 = vmatpush1.msra.mxu0 %v301
    %1569 = vmatprep.subr.mxu0 %v306
    %1570 = vmatpush1.msra.mxu0 %v305
    %1571 = vmatprep.subr.mxu0 %v310
    %1572 = vmatpush1.msra.mxu0 %v309
    %1573 = vmatprep.subr.mxu0 %v314
    %1574 = vmatpush1.msra.mxu0 %v313
    %1575 = vmatprep.subr.mxu0 %v318
    %1576 = vmatpush1.msra.mxu0 %v317
    %1577 = vmatprep.subr.mxu0 %v322
    %1578 = vmatpush1.msra.mxu0 %v321
    %1579 = vmatprep.subr.mxu0 %v326
    %1580 = vmatpush1.msra.mxu0 %v325
    %1581 = vmatprep.subr.mxu0 %v330
    %1582 = vmatpush1.msra.mxu0 %v329
    %1583 = vmatprep.subr.mxu0 %v334
    %1584 = vmatpush1.msra.mxu0 %v333
    %1585 = vmatprep.subr.mxu0 %v338
    %1586 = vmatpush1.msra.mxu0 %v337
    %1587 = vmatprep.subr.mxu0 %v342
    %1588 = vmatpush1.msra.mxu0 %v341
    %1589 = vmatprep.subr.mxu0 %v346
    %1590 = vmatpush1.msra.mxu0 %v345
    %1591 = vmatprep.subr.mxu0 %v350
    %1592 = vmatpush1.msra.mxu0 %v349
    %1593 = vmatprep.subr.mxu0 %v354
    %1594 = vmatpush1.msra.mxu0 %v353
    %1595 = vmatprep.subr.mxu0 0.0
    %1596 = vmatpush1.msra.mxu0 0.0
    %1597 = vmatprep.subr.mxu0 0.0
    %1598 = vmatpush1.msra.mxu0 0.0
    %1599 = vmatprep.subr.mxu0 0.0
    %1600 = vmatpush1.msra.mxu0 0.0
    %1601 = vmatprep.subr.mxu0 0.0
    %1602 = vmatpush1.msra.mxu0 0.0
    %1603 = vmatprep.subr.mxu0 0.0
    %1604 = vmatpush1.msra.mxu0 0.0
    %1605 = vmatprep.subr.mxu0 0.0
    %1606 = vmatpush1.msra.mxu0 0.0
    %1607 = vmatprep.subr.mxu0 0.0
    %1608 = vmatpush1.msra.mxu0 0.0
    %1609 = vmatprep.subr.mxu0 0.0
    %1610 = vmatpush1.msra.mxu0 0.0
    %1611 = vmatprep.subr.mxu0 0.0
    %1612 = vmatpush1.msra.mxu0 0.0
    %1613 = vmatprep.subr.mxu0 0.0
    %1614 = vmatpush1.msra.mxu0 0.0
    %1615 = vmatprep.subr.mxu0 0.0
    %1616 = vmatpush1.msra.mxu0 0.0
    %1617 = vmatprep.subr.mxu0 0.0
    %1618 = vmatpush1.msra.mxu0 0.0
    %1619 = vmatprep.subr.mxu0 0.0
    %1620 = vmatpush1.msra.mxu0 0.0
    %1621 = vmatprep.subr.mxu0 0.0
    %1622 = vmatpush1.msra.mxu0 0.0
    %1623 = vmatprep.subr.mxu0 0.0
    %1624 = vmatpush1.msra.mxu0 0.0
    %1625 = vmatprep.subr.mxu0 0.0
    %1626 = vmatpush1.msra.mxu0 0.0
    %1627 = vmatprep.mubr.f32.mxu0 0.0
    %1628 = vmatmul.mubr.f32.gmra.mrb[0].mxu0 %v1490
    %v1629 = vpop.f32.mrb[0].mxu0
    %v1630 = vadd.f32 0.0, %v1629
    %v1631 = vpop.f32.mrb[0].mxu0
    %v1632 = vadd.f32 0.0, %v1631
    %1633 = vdwg.mxu0
    %v1638 = vrot.slane %v1559, 2
    %v1639 = vrot.slane %v1561, 2
    %v1640 = vrot.slane %v1630, 2
    %v1641 = vrot.slane %v1632, 2
    %v1646 = vadd.f32 %v210, %v1638
    %v1647 = vadd.f32 %v212, %v1639
    %v1648 = vadd.f32 %v287, %v1640
    %v1649 = vadd.f32 %v289, %v1641
    %v1650 = vxor.u32 %v1646, 2147483648
    %v1651 = vxor.u32 %v1647, 2147483648
    %v1652 = vxor.u32 %v1649, 2147483648
    %v1653 = vmul.f32 %v1650, 1.442695
    %v1654 = vpow.pop %v1653
    %v1655 = vmul.f32 %v1651, 1.442695
    %v1656 = vpow.pop %v1655
    %v1657 = vmul.f32 %v1652, 1.442695
    %v1658 = vpow.pop %v1657
    %v1659 = vadd.f32 %v1654, 1.0
    %v1660 = vadd.f32 %v1656, 1.0
    %v1661 = vadd.f32 %v1658, 1.0
    %v1662 = vrcp.pop %v1659
    %v1663 = vmul.f32 1.0, %v1662
    %v1664 = vrcp.pop %v1660
    %v1665 = vmul.f32 1.0, %v1664
    %v1666 = vrcp.pop %v1661
    %v1667 = vmul.f32 1.0, %v1666
    %v1668 = vtanh.pop %v1648
    %v1670 = vrot.slane %v1486, 6
    %v1672 = vmul.f32 %v1665, %v1670
    %v1673 = vmul.f32 %v1663, %v1668
    %v1674 = vadd.f32 %v1672, %v1673
    %v1675 = vtanh.pop %v1674
    %v1676 = vmul.f32 %v1667, %v1675
    %vm1677 = vcmask 1041408
    %v1678 = vsel %vm1677, %v378, %v563
    %vm1679 = vcmask 1043456
    %v1680 = vsel %vm1679, %v1678, %v751
    %vm1681 = vcmask 1045504
    %v1682 = vsel %vm1681, %v1680, %v939
    %v1683 = vsel %vm1677, %v1115, %v1300
    %v1684 = vsel %vm1679, %v1683, %v1488
    %v1685 = vsel %vm1681, %v1684, %v1676
    %v1686 = vld [vmem:[#allocation10] sm:$0xff]
    %v1687 = vld [vmem:[#allocation10 + $0x8] sm:$0xff]
    %v1688 = vld [vmem:[#allocation10 + $0x10] sm:$0xff]
    %v1689 = vld [vmem:[#allocation10 + $0x18] sm:$0xff]
    %v1690 = vld [vmem:[#allocation10 + $0x20] sm:$0xff]
    %v1691 = vld [vmem:[#allocation10 + $0x28] sm:$0xff]
    %v1692 = vld [vmem:[#allocation10 + $0x30] sm:$0xff]
    %v1693 = vld [vmem:[#allocation10 + $0x38] sm:$0xff]
    %v1694 = vld [vmem:[#allocation10 + $0x40] sm:$0xff]
    %v1695 = vld [vmem:[#allocation10 + $0x48] sm:$0xff]
    %v1696 = vld [vmem:[#allocation10 + $0x50] sm:$0xff]
    %v1697 = vld [vmem:[#allocation10 + $0x58] sm:$0xff]
    %v1698 = vld [vmem:[#allocation10 + $0x60] sm:$0xff]
    %v1699 = vld [vmem:[#allocation10 + $0x68] sm:$0xff]
    %v1700 = vld [vmem:[#allocation10 + $0x70] sm:$0xff]
    %v1701 = vld [vmem:[#allocation10 + $0x78] sm:$0xff]
    %v1702 = vld [vmem:[#allocation10 + $0x80] sm:$0xff]
    %v1703 = vld [vmem:[#allocation10 + $0x88] sm:$0xff]
    %v1704 = vld [vmem:[#allocation10 + $0x90] sm:$0xff]
    %v1705 = vld [vmem:[#allocation10 + $0x98] sm:$0xff]
    %v1706 = vld [vmem:[#allocation10 + $0xa0] sm:$0xff]
    %v1707 = vld [vmem:[#allocation10 + $0xa8] sm:$0xff]
    %v1708 = vld [vmem:[#allocation10 + $0xb0] sm:$0xff]
    %v1709 = vld [vmem:[#allocation10 + $0xb8] sm:$0xff]
    %v1710 = vld [vmem:[#allocation10 + $0xc0] sm:$0xff]
    %v1711 = vld [vmem:[#allocation10 + $0xc8] sm:$0xff]
    %v1712 = vld [vmem:[#allocation10 + $0xd0] sm:$0xff]
    %v1713 = vld [vmem:[#allocation10 + $0xd8] sm:$0xff]
    %v1714 = vld [vmem:[#allocation10 + $0xe0] sm:$0xff]
    %v1715 = vld [vmem:[#allocation10 + $0xe8] sm:$0xff]
    %v1716 = vld [vmem:[#allocation10 + $0xf0] sm:$0xff]
    %v1717 = vld [vmem:[#allocation10 + $0xf8] sm:$0xff]
    %v1718 = vld [vmem:[%s6] sm:$0x3]
    %v1720 = vlaneseq
    %v1721 = vshrl.u32 %v1720, 7
    %v1722 = vsub.s32 0, %v1721
    %v1723 = vrot.slane %v1718, %v1722
    %v1724 = vlaneseq
    %v1725 = vshrl.u32 %v1724, 7
    %v1726 = vsub.s32 1, %v1725
    %v1727 = vrot.slane %v1718, %v1726
    %1730 = vmatprep.subr.mxu0 %v1687
    %1731 = vmatpush1.msra.mxu0 %v1686
    %1732 = vmatprep.subr.mxu0 %v1689
    %1733 = vmatpush1.msra.mxu0 %v1688
    %1734 = vmatprep.subr.mxu0 %v1691
    %1735 = vmatpush1.msra.mxu0 %v1690
    %1736 = vmatprep.subr.mxu0 %v1693
    %1737 = vmatpush1.msra.mxu0 %v1692
    %1738 = vmatprep.subr.mxu0 %v1695
    %1739 = vmatpush1.msra.mxu0 %v1694
    %1740 = vmatprep.subr.mxu0 %v1697
    %1741 = vmatpush1.msra.mxu0 %v1696
    %1742 = vmatprep.subr.mxu0 %v1699
    %1743 = vmatpush1.msra.mxu0 %v1698
    %1744 = vmatprep.subr.mxu0 %v1701
    %1745 = vmatpush1.msra.mxu0 %v1700
    %1746 = vmatprep.subr.mxu0 %v1703
    %1747 = vmatpush1.msra.mxu0 %v1702
    %1748 = vmatprep.subr.mxu0 %v1705
    %1749 = vmatpush1.msra.mxu0 %v1704
    %1750 = vmatprep.subr.mxu0 %v1707
    %1751 = vmatpush1.msra.mxu0 %v1706
    %1752 = vmatprep.subr.mxu0 %v1709
    %1753 = vmatpush1.msra.mxu0 %v1708
    %1754 = vmatprep.subr.mxu0 %v1711
    %1755 = vmatpush1.msra.mxu0 %v1710
    %1756 = vmatprep.subr.mxu0 %v1713
    %1757 = vmatpush1.msra.mxu0 %v1712
    %1758 = vmatprep.subr.mxu0 %v1715
    %1759 = vmatpush1.msra.mxu0 %v1714
    %1760 = vmatprep.subr.mxu0 %v1717
    %1761 = vmatpush1.msra.mxu0 %v1716
    %1762 = vmatprep.subr.mxu0 0.0
    %1763 = vmatpush1.msra.mxu0 0.0
    %1764 = vmatprep.subr.mxu0 0.0
    %1765 = vmatpush1.msra.mxu0 0.0
    %1766 = vmatprep.subr.mxu0 0.0
    %1767 = vmatpush1.msra.mxu0 0.0
    %1768 = vmatprep.subr.mxu0 0.0
    %1769 = vmatpush1.msra.mxu0 0.0
    %1770 = vmatprep.subr.mxu0 0.0
    %1771 = vmatpush1.msra.mxu0 0.0
    %1772 = vmatprep.subr.mxu0 0.0
    %1773 = vmatpush1.msra.mxu0 0.0
    %1774 = vmatprep.subr.mxu0 0.0
    %1775 = vmatpush1.msra.mxu0 0.0
    %1776 = vmatprep.subr.mxu0 0.0
    %1777 = vmatpush1.msra.mxu0 0.0
    %1778 = vmatprep.subr.mxu0 0.0
    %1779 = vmatpush1.msra.mxu0 0.0
    %1780 = vmatprep.subr.mxu0 0.0
    %1781 = vmatpush1.msra.mxu0 0.0
    %1782 = vmatprep.subr.mxu0 0.0
    %1783 = vmatpush1.msra.mxu0 0.0
    %1784 = vmatprep.subr.mxu0 0.0
    %1785 = vmatpush1.msra.mxu0 0.0
    %1786 = vmatprep.subr.mxu0 0.0
    %1787 = vmatpush1.msra.mxu0 0.0
    %1788 = vmatprep.subr.mxu0 0.0
    %1789 = vmatpush1.msra.mxu0 0.0
    %1790 = vmatprep.subr.mxu0 0.0
    %1791 = vmatpush1.msra.mxu0 0.0
    %1792 = vmatprep.subr.mxu0 0.0
    %1793 = vmatpush1.msra.mxu0 0.0
    %1794 = vmatprep.mubr.f32.mxu0 0.0
    %1795 = vmatmul.mubr.f32.gmra.mrb[0].mxu0 %v1682
    %v1796 = vpop.f32.mrb[0].mxu0
    %v1797 = vadd.f32 %v1723, %v1796
    %v1798 = vpop.f32.mrb[0].mxu0
    %v1799 = vadd.f32 %v1727, %v1798
    %1800 = vmatprep.mubr.f32.mxu0 0.0
    %1801 = vmatmul.mubr.f32.gmra.mrb[0].mxu0 %v1685
    %v1802 = vpop.f32.mrb[0].mxu0
    %v1803 = vadd.f32 %v1723, %v1802
    %v1804 = vpop.f32.mrb[0].mxu0
    %v1805 = vadd.f32 %v1727, %v1804
    %1806 = vdwg.mxu0
    %1807 = vmax.xlane.f32.xlu0 %v1797
    %v1808 = vpop.xlane.xlu0 %1807
    %1809 = vmax.xlane.f32.xlu0 %v1803
    %v1810 = vpop.xlane.xlu0 %1809
    %v1811 = vsub.f32 %v1797, %v1808
    %v1812 = vsub.f32 %v1803, %v1810
    %v1813 = vmul.f32 %v1811, 1.442695
    %v1814 = vpow.pop %v1813
    %v1815 = vmul.f32 %v1812, 1.442695
    %v1816 = vpow.pop %v1815
    %1817 = vadd.xlane.f32.xlu0 %v1814
    %v1818 = vpop.xlane.xlu0 %1817
    %1819 = vadd.xlane.f32.xlu0 %v1816
    %v1820 = vpop.xlane.xlu0 %1819
    %v1821 = vrcp.pop %v1818
    %v1822 = vrcp.pop %v1820
    %v1823 = vmul.f32 %v1818, %v1821
    %v1824 = vmul.f32 %v1820, %v1822
    %v1825 = vsub.f32 2.0, %v1823
    %v1826 = vsub.f32 2.0, %v1824
    %v1827 = vmul.f32 %v1821, %v1825
    %v1828 = vmul.f32 %v1822, %v1826
    %v1829 = vmul.f32 %v1814, %v1827
    %v1830 = vmul.f32 %v1816, %v1828
    %1831 = vmax.xlane.f32.xlu0 %v1799
    %v1832 = vpop.xlane.xlu0 %1831
    %1833 = vmax.xlane.f32.xlu0 %v1805
    %v1834 = vpop.xlane.xlu0 %1833
    %v1835 = vsub.f32 %v1799, %v1832
    %v1836 = vsub.f32 %v1805, %v1834
    %v1837 = vmul.f32 %v1835, 1.442695
    %v1838 = vpow.pop %v1837
    %v1839 = vmul.f32 %v1836, 1.442695
    %v1840 = vpow.pop %v1839
    %1841 = vadd.xlane.f32.xlu0 %v1838
    %v1842 = vpop.xlane.xlu0 %1841
    %1843 = vadd.xlane.f32.xlu0 %v1840
    %v1844 = vpop.xlane.xlu0 %1843
    %v1845 = vrcp.pop %v1842
    %v1846 = vrcp.pop %v1844
    %v1847 = vmul.f32 %v1842, %v1845
    %v1848 = vmul.f32 %v1844, %v1846
    %v1849 = vsub.f32 2.0, %v1847
    %v1850 = vsub.f32 2.0, %v1848
    %v1851 = vmul.f32 %v1845, %v1849
    %v1852 = vmul.f32 %v1846, %v1850
    %v1853 = vmul.f32 %v1838, %v1851
    %v1854 = vmul.f32 %v1840, %v1852
    %v1855 = vld [vmem:[#allocation8] sm:$0xff]
    %v1856 = vld [vmem:[#allocation8 + $0x8] sm:$0xff]
    %v1857 = vld [vmem:[#allocation8 + $0x10] sm:$0xff]
    %v1858 = vld [vmem:[#allocation8 + $0x18] sm:$0xff]
    %v1859 = vld [vmem:[#allocation8 + $0x20] sm:$0xff]
    %v1860 = vld [vmem:[#allocation8 + $0x28] sm:$0xff]
    %v1861 = vld [vmem:[#allocation8 + $0x30] sm:$0xff]
    %v1862 = vld [vmem:[#allocation8 + $0x38] sm:$0xff]
    %v1863 = vld [vmem:[#allocation8 + $0x40] sm:$0xff]
    %v1864 = vld [vmem:[#allocation8 + $0x48] sm:$0xff]
    %v1865 = vld [vmem:[#allocation8 + $0x50] sm:$0xff]
    %v1866 = vld [vmem:[#allocation8 + $0x58] sm:$0xff]
    %v1867 = vld [vmem:[#allocation8 + $0x60] sm:$0xff]
    %v1868 = vld [vmem:[#allocation8 + $0x68] sm:$0xff]
    %v1869 = vld [vmem:[#allocation8 + $0x70] sm:$0xff]
    %v1870 = vld [vmem:[#allocation8 + $0x78] sm:$0xff]
    %1871 = vxpose.xlu0.b32.start [1/16] %v1853, 128
    %1872 = vxpose.xlu0.b32.cont [2/16] %v1854, 128
    %1873 = vxpose.xlu0.b32.cont [3/16] 0.0, 128
    %1874 = vxpose.xlu0.b32.cont [4/16] 0.0, 128
    %1875 = vxpose.xlu0.b32.cont [5/16] 0.0, 128
    %1876 = vxpose.xlu0.b32.cont [6/16] 0.0, 128
    %1877 = vxpose.xlu0.b32.cont [7/16] 0.0, 128
    %1878 = vxpose.xlu0.b32.cont [8/16] 0.0, 128
    %1879 = vxpose.xlu0.b32.cont [9/16] 0.0, 128
    %1880 = vxpose.xlu0.b32.cont [10/16] 0.0, 128
    %1881 = vxpose.xlu0.b32.cont [11/16] 0.0, 128
    %1882 = vxpose.xlu0.b32.cont [12/16] 0.0, 128
    %1883 = vxpose.xlu0.b32.cont [13/16] 0.0, 128
    %1884 = vxpose.xlu0.b32.cont [14/16] 0.0, 128
    %1885 = vxpose.xlu0.b32.cont [15/16] 0.0, 128
    %1886 = vxpose.xlu0.b32.end [16/16] 0.0, 128
    %v1887 = vpop.trf.xlu0
    %v1888 = vpop.trf.xlu0
    %v1889 = vpop.trf.xlu0
    %v1890 = vpop.trf.xlu0
    %v1891 = vpop.trf.xlu0
    %v1892 = vpop.trf.xlu0
    %v1893 = vpop.trf.xlu0
    %v1894 = vpop.trf.xlu0
    %v1895 = vpop.trf.xlu0
    %v1896 = vpop.trf.xlu0
    %v1897 = vpop.trf.xlu0
    %v1898 = vpop.trf.xlu0
    %v1899 = vpop.trf.xlu0
    %v1900 = vpop.trf.xlu0
    %v1901 = vpop.trf.xlu0
    %v1902 = vpop.trf.xlu0
    %v1904 = vsel %vm130, %v1887, 0
    %v1907 = vsel %vm130, %v1888, 0
    %v1910 = vsel %vm130, %v1889, 0
    %v1913 = vsel %vm130, %v1890, 0
    %v1916 = vsel %vm130, %v1891, 0
    %v1919 = vsel %vm130, %v1892, 0
    %v1922 = vsel %vm130, %v1893, 0
    %v1925 = vsel %vm130, %v1894, 0
    %v1928 = vsel %vm130, %v1895, 0
    %v1931 = vsel %vm130, %v1896, 0
    %v1934 = vsel %vm130, %v1897, 0
    %v1937 = vsel %vm130, %v1898, 0
    %v1940 = vsel %vm130, %v1899, 0
    %v1943 = vsel %vm130, %v1900, 0
    %v1946 = vsel %vm130, %v1901, 0
    %v1949 = vsel %vm130, %v1902, 0
    %1951 = vmatprep.subr.mxu0 0.0
    %1952 = vmatpush1.msra.mxu0 %v1682
    %1953 = vmatprep.subr.mxu0 0.0
    %1954 = vmatpush1.msra.mxu0 %v1685
    %1955 = vmatprep.subr.mxu0 0.0
    %1956 = vmatpush1.msra.mxu0 0.0
    %1957 = vmatprep.subr.mxu0 0.0
    %1958 = vmatpush1.msra.mxu0 0.0
    %1959 = vmatprep.subr.mxu0 0.0
    %1960 = vmatpush1.msra.mxu0 0.0
    %1961 = vmatprep.subr.mxu0 0.0
    %1962 = vmatpush1.msra.mxu0 0.0
    %1963 = vmatprep.subr.mxu0 0.0
    %1964 = vmatpush1.msra.mxu0 0.0
    %1965 = vmatprep.subr.mxu0 0.0
    %1966 = vmatpush1.msra.mxu0 0.0
    %1967 = vmatprep.subr.mxu0 0.0
    %1968 = vmatpush1.msra.mxu0 0.0
    %1969 = vmatprep.subr.mxu0 0.0
    %1970 = vmatpush1.msra.mxu0 0.0
    %1971 = vmatprep.subr.mxu0 0.0
    %1972 = vmatpush1.msra.mxu0 0.0
    %1973 = vmatprep.subr.mxu0 0.0
    %1974 = vmatpush1.msra.mxu0 0.0
    %1975 = vmatprep.subr.mxu0 0.0
    %1976 = vmatpush1.msra.mxu0 0.0
    %1977 = vmatprep.subr.mxu0 0.0
    %1978 = vmatpush1.msra.mxu0 0.0
    %1979 = vmatprep.subr.mxu0 0.0
    %1980 = vmatpush1.msra.mxu0 0.0
    %1981 = vmatprep.subr.mxu0 0.0
    %1982 = vmatpush1.msra.mxu0 0.0
    %1983 = vmatprep.subr.mxu0 0.0
    %1984 = vmatpush1.msra.mxu0 0.0
    %1985 = vmatprep.subr.mxu0 0.0
    %1986 = vmatpush1.msra.mxu0 0.0
    %1987 = vmatprep.subr.mxu0 0.0
    %1988 = vmatpush1.msra.mxu0 0.0
    %1989 = vmatprep.subr.mxu0 0.0
    %1990 = vmatpush1.msra.mxu0 0.0
    %1991 = vmatprep.subr.mxu0 0.0
    %1992 = vmatpush1.msra.mxu0 0.0
    %1993 = vmatprep.subr.mxu0 0.0
    %1994 = vmatpush1.msra.mxu0 0.0
    %1995 = vmatprep.subr.mxu0 0.0
    %1996 = vmatpush1.msra.mxu0 0.0
    %1997 = vmatprep.subr.mxu0 0.0
    %1998 = vmatpush1.msra.mxu0 0.0
    %1999 = vmatprep.subr.mxu0 0.0
    %2000 = vmatpush1.msra.mxu0 0.0
    %2001 = vmatprep.subr.mxu0 0.0
    %2002 = vmatpush1.msra.mxu0 0.0
    %2003 = vmatprep.subr.mxu0 0.0
    %2004 = vmatpush1.msra.mxu0 0.0
    %2005 = vmatprep.subr.mxu0 0.0
    %2006 = vmatpush1.msra.mxu0 0.0
    %2007 = vmatprep.subr.mxu0 0.0
    %2008 = vmatpush1.msra.mxu0 0.0
    %2009 = vmatprep.subr.mxu0 0.0
    %2010 = vmatpush1.msra.mxu0 0.0
    %2011 = vmatprep.subr.mxu0 0.0
    %2012 = vmatpush1.msra.mxu0 0.0
    %2013 = vmatprep.subr.mxu0 0.0
    %2014 = vmatpush1.msra.mxu0 0.0
    %2015 = vmatprep.mubr.f32.mxu0 0.0
    %2016 = vmatmul.mubr.f32.gmra.mrb[0].mxu0 %v1904
    %v2017 = vpop.f32.mrb[0].mxu0
    %v2018 = vadd.f32 0.0, %v2017
    %v2019 = vpop.f32.mrb[0].mxu0
    %2020 = vmatprep.mubr.f32.mxu0 0.0
    %2021 = vmatmul.mubr.f32.gmra.mrb[0].mxu0 %v1907
    %v2022 = vpop.f32.mrb[0].mxu0
    %v2023 = vadd.f32 0.0, %v2022
    %v2024 = vpop.f32.mrb[0].mxu0
    %2025 = vmatprep.mubr.f32.mxu0 0.0
    %2026 = vmatmul.mubr.f32.gmra.mrb[0].mxu0 %v1910
    %v2027 = vpop.f32.mrb[0].mxu0
    %v2028 = vadd.f32 0.0, %v2027
    %v2029 = vpop.f32.mrb[0].mxu0
    %2030 = vmatprep.mubr.f32.mxu0 0.0
    %2031 = vmatmul.mubr.f32.gmra.mrb[0].mxu0 %v1913
    %v2032 = vpop.f32.mrb[0].mxu0
    %v2033 = vadd.f32 0.0, %v2032
    %v2034 = vpop.f32.mrb[0].mxu0
    %2035 = vmatprep.mubr.f32.mxu0 0.0
    %2036 = vmatmul.mubr.f32.gmra.mrb[0].mxu0 %v1916
    %v2037 = vpop.f32.mrb[0].mxu0
    %v2038 = vadd.f32 0.0, %v2037
    %v2039 = vpop.f32.mrb[0].mxu0
    %2040 = vmatprep.mubr.f32.mxu0 0.0
    %2041 = vmatmul.mubr.f32.gmra.mrb[0].mxu0 %v1919
    %v2042 = vpop.f32.mrb[0].mxu0
    %v2043 = vadd.f32 0.0, %v2042
    %v2044 = vpop.f32.mrb[0].mxu0
    %2045 = vmatprep.mubr.f32.mxu0 0.0
    %2046 = vmatmul.mubr.f32.gmra.mrb[0].mxu0 %v1922
    %v2047 = vpop.f32.mrb[0].mxu0
    %v2048 = vadd.f32 0.0, %v2047
    %v2049 = vpop.f32.mrb[0].mxu0
    %2050 = vmatprep.mubr.f32.mxu0 0.0
    %2051 = vmatmul.mubr.f32.gmra.mrb[0].mxu0 %v1925
    %v2052 = vpop.f32.mrb[0].mxu0
    %v2053 = vadd.f32 0.0, %v2052
    %v2054 = vpop.f32.mrb[0].mxu0
    %2055 = vmatprep.mubr.f32.mxu0 0.0
    %2056 = vmatmul.mubr.f32.gmra.mrb[0].mxu0 %v1928
    %v2057 = vpop.f32.mrb[0].mxu0
    %v2058 = vadd.f32 0.0, %v2057
    %v2059 = vpop.f32.mrb[0].mxu0
    %2060 = vmatprep.mubr.f32.mxu0 0.0
    %2061 = vmatmul.mubr.f32.gmra.mrb[0].mxu0 %v1931
    %v2062 = vpop.f32.mrb[0].mxu0
    %v2063 = vadd.f32 0.0, %v2062
    %v2064 = vpop.f32.mrb[0].mxu0
    %2065 = vmatprep.mubr.f32.mxu0 0.0
    %2066 = vmatmul.mubr.f32.gmra.mrb[0].mxu0 %v1934
    %v2067 = vpop.f32.mrb[0].mxu0
    %v2068 = vadd.f32 0.0, %v2067
    %v2069 = vpop.f32.mrb[0].mxu0
    %2070 = vmatprep.mubr.f32.mxu0 0.0
    %2071 = vmatmul.mubr.f32.gmra.mrb[0].mxu0 %v1937
    %v2072 = vpop.f32.mrb[0].mxu0
    %v2073 = vadd.f32 0.0, %v2072
    %v2074 = vpop.f32.mrb[0].mxu0
    %2075 = vmatprep.mubr.f32.mxu0 0.0
    %2076 = vmatmul.mubr.f32.gmra.mrb[0].mxu0 %v1940
    %v2077 = vpop.f32.mrb[0].mxu0
    %v2078 = vadd.f32 0.0, %v2077
    %v2079 = vpop.f32.mrb[0].mxu0
    %2080 = vmatprep.mubr.f32.mxu0 0.0
    %2081 = vmatmul.mubr.f32.gmra.mrb[0].mxu0 %v1943
    %v2082 = vpop.f32.mrb[0].mxu0
    %v2083 = vadd.f32 0.0, %v2082
    %v2084 = vpop.f32.mrb[0].mxu0
    %2085 = vmatprep.mubr.f32.mxu0 0.0
    %2086 = vmatmul.mubr.f32.gmra.mrb[0].mxu0 %v1946
    %v2087 = vpop.f32.mrb[0].mxu0
    %v2088 = vadd.f32 0.0, %v2087
    %v2089 = vpop.f32.mrb[0].mxu0
    %2090 = vmatprep.mubr.f32.mxu0 0.0
    %2091 = vmatmul.mubr.f32.gmra.mrb[0].mxu0 %v1949
    %v2092 = vpop.f32.mrb[0].mxu0
    %v2093 = vadd.f32 0.0, %v2092
    %v2094 = vpop.f32.mrb[0].mxu0
    %2095 = vdwg.mxu0
    %2096 = vmatprep.subr.mxu0 0.0
    %2097 = vmatpush1.msra.mxu0 %v1855
    %2098 = vmatprep.subr.mxu0 0.0
    %2099 = vmatpush1.msra.mxu0 %v1856
    %2100 = vmatprep.subr.mxu0 0.0
    %2101 = vmatpush1.msra.mxu0 %v1857
    %2102 = vmatprep.subr.mxu0 0.0
    %2103 = vmatpush1.msra.mxu0 %v1858
    %2104 = vmatprep.subr.mxu0 0.0
    %2105 = vmatpush1.msra.mxu0 %v1859
    %2106 = vmatprep.subr.mxu0 0.0
    %2107 = vmatpush1.msra.mxu0 %v1860
    %2108 = vmatprep.subr.mxu0 0.0
    %2109 = vmatpush1.msra.mxu0 %v1861
    %2110 = vmatprep.subr.mxu0 0.0
    %2111 = vmatpush1.msra.mxu0 %v1862
    %2112 = vmatprep.subr.mxu0 0.0
    %2113 = vmatpush1.msra.mxu0 %v1863
    %2114 = vmatprep.subr.mxu0 0.0
    %2115 = vmatpush1.msra.mxu0 %v1864
    %2116 = vmatprep.subr.mxu0 0.0
    %2117 = vmatpush1.msra.mxu0 %v1865
    %2118 = vmatprep.subr.mxu0 0.0
    %2119 = vmatpush1.msra.mxu0 %v1866
    %2120 = vmatprep.subr.mxu0 0.0
    %2121 = vmatpush1.msra.mxu0 %v1867
    %2122 = vmatprep.subr.mxu0 0.0
    %2123 = vmatpush1.msra.mxu0 %v1868
    %2124 = vmatprep.subr.mxu0 0.0
    %2125 = vmatpush1.msra.mxu0 %v1869
    %2126 = vmatprep.subr.mxu0 0.0
    %2127 = vmatpush1.msra.mxu0 %v1870
    %2128 = vmatprep.subr.mxu0 0.0
    %2129 = vmatpush1.msra.mxu0 0.0
    %2130 = vmatprep.subr.mxu0 0.0
    %2131 = vmatpush1.msra.mxu0 0.0
    %2132 = vmatprep.subr.mxu0 0.0
    %2133 = vmatpush1.msra.mxu0 0.0
    %2134 = vmatprep.subr.mxu0 0.0
    %2135 = vmatpush1.msra.mxu0 0.0
    %2136 = vmatprep.subr.mxu0 0.0
    %2137 = vmatpush1.msra.mxu0 0.0
    %2138 = vmatprep.subr.mxu0 0.0
    %2139 = vmatpush1.msra.mxu0 0.0
    %2140 = vmatprep.subr.mxu0 0.0
    %2141 = vmatpush1.msra.mxu0 0.0
    %2142 = vmatprep.subr.mxu0 0.0
    %2143 = vmatpush1.msra.mxu0 0.0
    %2144 = vmatprep.subr.mxu0 0.0
    %2145 = vmatpush1.msra.mxu0 0.0
    %2146 = vmatprep.subr.mxu0 0.0
    %2147 = vmatpush1.msra.mxu0 0.0
    %2148 = vmatprep.subr.mxu0 0.0
    %2149 = vmatpush1.msra.mxu0 0.0
    %2150 = vmatprep.subr.mxu0 0.0
    %2151 = vmatpush1.msra.mxu0 0.0
    %2152 = vmatprep.subr.mxu0 0.0
    %2153 = vmatpush1.msra.mxu0 0.0
    %2154 = vmatprep.subr.mxu0 0.0
    %2155 = vmatpush1.msra.mxu0 0.0
    %2156 = vmatprep.subr.mxu0 0.0
    %2157 = vmatpush1.msra.mxu0 0.0
    %2158 = vmatprep.subr.mxu0 0.0
    %2159 = vmatpush1.msra.mxu0 0.0
    %2160 = vmatprep.mubr.f32.mxu0 0.0
    %2161 = vmatmul.mubr.f32.gmra.mrb[0].mxu0 %v1829
    %v2162 = vpop.f32.mrb[0].mxu0
    %v2163 = vadd.f32 %v1682, %v2162
    %v2164 = vpop.f32.mrb[0].mxu0
    %2165 = vmatprep.mubr.f32.mxu0 0.0
    %2166 = vmatmul.mubr.f32.gmra.mrb[0].mxu0 %v1830
    %v2167 = vpop.f32.mrb[0].mxu0
    %v2168 = vadd.f32 %v1685, %v2167
    %v2169 = vpop.f32.mrb[0].mxu0
    %2170 = vdwg.mxu0
    %2171 = vst [vmem:[#allocation11] sm:$0xff] %v2163
    %2172 = vst [vmem:[#allocation11 + $0x8] sm:$0xff] %v2168
    %v2173 = vld [vmem:[#allocation8] sm:$0xff]
    %v2174 = vld [vmem:[#allocation8 + $0x8] sm:$0xff]
    %v2175 = vld [vmem:[#allocation8 + $0x10] sm:$0xff]
    %v2176 = vld [vmem:[#allocation8 + $0x18] sm:$0xff]
    %v2177 = vld [vmem:[#allocation8 + $0x20] sm:$0xff]
    %v2178 = vld [vmem:[#allocation8 + $0x28] sm:$0xff]
    %v2179 = vld [vmem:[#allocation8 + $0x30] sm:$0xff]
    %v2180 = vld [vmem:[#allocation8 + $0x38] sm:$0xff]
    %v2181 = vld [vmem:[#allocation8 + $0x40] sm:$0xff]
    %v2182 = vld [vmem:[#allocation8 + $0x48] sm:$0xff]
    %v2183 = vld [vmem:[#allocation8 + $0x50] sm:$0xff]
    %v2184 = vld [vmem:[#allocation8 + $0x58] sm:$0xff]
    %v2185 = vld [vmem:[#allocation8 + $0x60] sm:$0xff]
    %v2186 = vld [vmem:[#allocation8 + $0x68] sm:$0xff]
    %v2187 = vld [vmem:[#allocation8 + $0x70] sm:$0xff]
    %v2188 = vld [vmem:[#allocation8 + $0x78] sm:$0xff]
    %v2189 = vadd.f32 %v2173, %v2018
    %v2190 = vadd.f32 %v2174, %v2023
    %v2191 = vadd.f32 %v2175, %v2028
    %v2192 = vadd.f32 %v2176, %v2033
    %v2193 = vadd.f32 %v2177, %v2038
    %v2194 = vadd.f32 %v2178, %v2043
    %v2195 = vadd.f32 %v2179, %v2048
    %v2196 = vadd.f32 %v2180, %v2053
    %v2197 = vadd.f32 %v2181, %v2058
    %v2198 = vadd.f32 %v2182, %v2063
    %v2199 = vadd.f32 %v2183, %v2068
    %v2200 = vadd.f32 %v2184, %v2073
    %v2201 = vadd.f32 %v2185, %v2078
    %v2202 = vadd.f32 %v2186, %v2083
    %v2203 = vadd.f32 %v2187, %v2088
    %v2204 = vadd.f32 %v2188, %v2093
    %2205 = vst [vmem:[#allocation12] sm:$0xff] %v2189
    %2206 = vst [vmem:[#allocation12 + $0x8] sm:$0xff] %v2190
    %2207 = vst [vmem:[#allocation12 + $0x10] sm:$0xff] %v2191
    %2208 = vst [vmem:[#allocation12 + $0x18] sm:$0xff] %v2192
    %2209 = vst [vmem:[#allocation12 + $0x20] sm:$0xff] %v2193
    %2210 = vst [vmem:[#allocation12 + $0x28] sm:$0xff] %v2194
    %2211 = vst [vmem:[#allocation12 + $0x30] sm:$0xff] %v2195
    %2212 = vst [vmem:[#allocation12 + $0x38] sm:$0xff] %v2196
    %2213 = vst [vmem:[#allocation12 + $0x40] sm:$0xff] %v2197
    %2214 = vst [vmem:[#allocation12 + $0x48] sm:$0xff] %v2198
    %2215 = vst [vmem:[#allocation12 + $0x50] sm:$0xff] %v2199
    %2216 = vst [vmem:[#allocation12 + $0x58] sm:$0xff] %v2200
    %2217 = vst [vmem:[#allocation12 + $0x60] sm:$0xff] %v2201
    %2218 = vst [vmem:[#allocation12 + $0x68] sm:$0xff] %v2202
    %2219 = vst [vmem:[#allocation12 + $0x70] sm:$0xff] %v2203
    %2220 = vst [vmem:[#allocation12 + $0x78] sm:$0xff] %v2204
    // Predicated region
    $region50: #{tpu_custom_call.1} parent=1 // pred_check
      _
    $region51: #{tpu_custom_call.1} parent=1 // pred_check_branch
      %2222 = sbr.rel (0) target = $region53
    $region52: #{tpu_custom_call.1} parent=1 // pred_region
      %s2224 = ssub.s32 256, 256
      %2225 = vsyncadd [#allocation4], %s2224
      %s2226 = sshll.u32 [#allocation11], 4
      %s2227 = int_to_ptr.vmem [resolvable:$true] %s2226
      %2232 = dma.vmem_to_hbm [thread:$0]  %s2227, 256, %s7, [#allocation4], 128, 128, 8
    $region53: #{tpu_custom_call.1} parent=1 // pred_fallthru
      _
    // Predicated region
    $region54: #{tpu_custom_call.1} parent=1 // pred_check
      _
    $region55: #{tpu_custom_call.1} parent=1 // pred_check_branch
      %2234 = sbr.rel (0) target = $region57
    $region56: #{tpu_custom_call.1} parent=1 // pred_region
      %s2236 = ssub.s32 2048, 2048
      %2237 = vsyncadd [#allocation13], %s2236
      %s2238 = sshll.u32 [#allocation12], 4
      %s2239 = int_to_ptr.vmem [resolvable:$true] %s2238
      %2244 = dma.vmem_to_hbm [thread:$0]  %s2239, 2048, %s8, [#allocation13], 128, 128, 8
    $region57: #{tpu_custom_call.1} parent=1 // pred_fallthru
      _
    // Predicated region
    $region58: #{tpu_custom_call.1} parent=1 // pred_check
      _
    $region59: #{tpu_custom_call.1} parent=1 // pred_check_branch
      %2246 = sbr.rel (0) target = $region61
    $region60: #{tpu_custom_call.1} parent=1 // pred_region
      %2247 = dma.done [#allocation4], 256
    $region61: #{tpu_custom_call.1} parent=1 // pred_fallthru
      _
    // Predicated region
    $region62: #{tpu_custom_call.1} parent=1 // pred_check
      _
    $region63: #{tpu_custom_call.1} parent=1 // pred_check_branch
      %2249 = sbr.rel (0) target = $region65
    $region64: #{tpu_custom_call.1} parent=1 // pred_region
      %2250 = dma.done [#allocation13], 2048
    $region65: #{tpu_custom_call.1} parent=1 // pred_fallthru
      _
    %2251 = vsyncpa [#allocation3], 1
    %2252 = vsyncpa [#allocation6], 1
    %2253 = vsyncpa [#allocation9], 1
    %2254 = vsyncpa [#allocation4], 1
    %2255 = vsyncpa [#allocation13], 1

</llo_original>
